<compile_context>
chip_gen: v7x
topology: tpu7x:2x2x1
jax: 0.10.0
libtpu: 0.0.40
codegen_flags: <defaults>
</compile_context>

<pallas_src>
import jax
import jax.numpy as jnp
from jax.experimental import pallas as pl
from jax.experimental.pallas import tpu as pltpu


MXU_DTYPE = jnp.bfloat16  # dtype of encoder matmul operands (f32 accumulation)


def _gelu(x):
    return jax.nn.gelu(x, approximate=True)


# ----------------------------------------------------------------------------
# Fused kernel: M graph encoders + missing-marker masking + concat aggregator
# MLP + all task heads, in a single invocation.
# ----------------------------------------------------------------------------
def fused_kernel(nf_ref, adj_ref, mask_ref, miss_ref,
                 enc_w_ref, enc_b_ref,
                 aw0_ref, ab0_ref, awh_ref, abh_ref, awo_ref, abo_ref,
                 hw0_ref, hb0_ref, hw1_ref, hb1_ref,
                 out_ref):
    M, B, N, F = nf_ref.shape
    D = enc_w_ref.shape[-1]
    H = ab0_ref.shape[-1]
    depth = awh_ref.shape[0]
    T = hw1_ref.shape[0]

    # ---- per-marker graph encoder (static unrolled loop, M is small) ----
    emb_cols = []
    for m in range(M):
        nf = nf_ref[m]                       # (B, N, F)  bf16
        adj = adj_ref[m]                     # (B, N, N)  bf16
        msk = mask_ref[m]                    # (B, N)     f32

        # feature projection as ONE 2-D MXU matmul: (B*N, F) @ (F, D)
        proj = jnp.dot(nf.reshape(B * N, F), enc_w_ref[m],
                       preferred_element_type=jnp.float32)       # (B*N, D) f32
        proj = proj.reshape(B, N, D).astype(nf.dtype)

        # message passing: adj @ proj (batched matmul, f32 accumulation)
        h = jnp.einsum('bij,bjd->bid', adj, proj,
                       preferred_element_type=jnp.float32)       # (B, N, D)
        h = jnp.maximum(h + enc_b_ref[m], 0.0)                   # ReLU (f32)

        # masked mean pooling over nodes
        s = jnp.sum(h * msk[:, :, None], axis=1)                 # (B, D)
        cnt = jnp.maximum(jnp.sum(msk, axis=1, keepdims=True), 1.0)
        e = s / cnt                                              # (B, D)

        # missing-marker masking (ref: embedding * missing[:, m].unsqueeze(1))
        emb_cols.append(e * miss_ref[:, m:m + 1])

    # lane-concatenated embedding slab: (B, M*D)
    emb = jnp.concatenate(emb_cols, axis=-1)

    # ---- concat aggregator MLP: single K = M*D matmul + hidden layers ----
    h = _gelu(jnp.dot(emb, aw0_ref[...],
                      preferred_element_type=jnp.float32) + ab0_ref[...])
    for l in range(depth):
        h = _gelu(jnp.dot(h, awh_ref[l],
                          preferred_element_type=jnp.float32) + abh_ref[l])
    agg = jnp.dot(h, awo_ref[...],
                  preferred_element_type=jnp.float32) + abo_ref[...]     # (B, D)

    # ---- task heads: merged first layer (D, T*H), per-task second layer ----
    hh = _gelu(jnp.dot(agg, hw0_ref[...],
                       preferred_element_type=jnp.float32) + hb0_ref[...])  # (B, T*H)
    outs = []
    for t in range(T):
        ht = hh[:, t * H:(t + 1) * H]                            # (B, H)
        outs.append(jnp.dot(ht, hw1_ref[t],
                            preferred_element_type=jnp.float32) + hb1_ref[t])
    out_ref[...] = jnp.concatenate(outs, axis=-1)                # (B, T*C)


# ----------------------------------------------------------------------------
# Full forward (mirrors GraphTransformerLateFusion.forward, concat aggregator)
# ----------------------------------------------------------------------------
def graph_transformer_late_fusion(node_feats, adjs, masks, missing, params):
    M = len(node_feats)
    B, N, F = node_feats[0].shape
    D = params['enc_w'].shape[-1]
    H = params['ab0'].shape[-1]
    depth = params['awh'].shape[0]
    T, _, C = params['hw1'].shape

    # Stack the per-marker lists once (single fused launch); cast encoder
    # matmul operands to bf16 (MXU inputs only, accumulation stays f32).
    nf_all = jnp.stack(node_feats, axis=0).astype(MXU_DTYPE)      # (M, B, N, F)
    adj_all = jnp.stack(adjs, axis=0).astype(MXU_DTYPE)           # (M, B, N, N)
    mask_all = jnp.stack(masks, axis=0).astype(jnp.float32)       # (M, B, N)
    enc_w = params['enc_w'].astype(MXU_DTYPE)                     # (M, F, D)

    # Aggregator first layer: per-marker blocks -> (M*D, H) so that
    # concat([e_0..e_{M-1}]) @ aw0 is a single matmul (row-block m matches the
    # marker concat order).
    aw0 = params['aw0'].reshape(M * D, H)
    # Merged head first layer: (T, D, H) -> (D, T*H) (lane-dense, T*H = 128).
    hw0m = jnp.transpose(params['hw0'], (1, 0, 2)).reshape(D, T * H)
    hb0m = params['hb0'].reshape(1, T * H)

    inputs = (nf_all, adj_all, mask_all, missing.astype(jnp.float32),
              enc_w, params['enc_b'],
              aw0, params['ab0'], params['awh'], params['abh'],
              params['awo'], params['abo'],
              hw0m, hb0m, params['hw1'], params['hb1'])

    # Advisory cost estimate so XLA schedules the tiny custom call tightly.
    flops = (M * 2 * B * N * F * D            # feature projection
             + M * 2 * B * N * N * D          # adjacency propagation
             + 2 * B * (M * D) * H            # aggregator input layer
             + depth * 2 * B * H * H          # aggregator hidden layers
             + 2 * B * H * D                  # aggregator output projection
             + 2 * B * D * (T * H)            # merged head first layers
             + T * 2 * B * H * C)             # head second layers
    transcendentals = B * H * (1 + depth) + B * T * H
    bytes_accessed = int(sum(int(a.size) * a.dtype.itemsize for a in inputs)
                         + B * T * C * 4)

    logits_slab = pl.pallas_call(
        fused_kernel,
        out_shape=jax.ShapeDtypeStruct((B, T * C), jnp.float32),
        in_specs=[pl.BlockSpec(memory_space=pltpu.MemorySpace.VMEM)] * len(inputs),
        out_specs=pl.BlockSpec(memory_space=pltpu.MemorySpace.VMEM),
        compiler_params=pltpu.CompilerParams(
            vmem_limit_bytes=32 * 1024 * 1024),
        cost_estimate=pl.CostEstimate(flops=flops,
                                      transcendentals=transcendentals,
                                      bytes_accessed=bytes_accessed),
    )(*inputs)

    # Re-layout the lane-packed slab to the reference's per-task list.
    logits = jnp.transpose(logits_slab.reshape(B, T, C), (1, 0, 2))   # (T, B, C)
    x = [logits[t] for t in range(T)]
    # not-finetune branch of the reference zeroes the auxiliary losses
    mc_losses = [jnp.zeros((), jnp.float32) for _ in range(M)]
    ortho_losses = [jnp.zeros((), jnp.float32) for _ in range(M)]
    return x, mc_losses, ortho_losses


# ----------------------------------------------------------------------------
# Deterministic parameter / input construction + run
# ----------------------------------------------------------------------------
if __name__ == "__main__":
    # config (mirrors args: markers='a,b,c', 2 tasks, embed_dim=32, mlp_ratio=2)
    B, N, F = 2, 8, 16       # batch, nodes per graph, node feature dim
    M = 3                    # num_markers
    T = 2                    # num_tasks
    C = 4                    # num_classes
    D = 32                   # embed_dim
    mlp_ratio = 2.0
    H = int(D * mlp_ratio)   # hidden_features (=64, so T*H = 128 lane-dense)
    depth = 1                # aggregator_depth

    key = jax.random.PRNGKey(0)
    ks = jax.random.split(key, 16)
    norm = lambda k, s: (0.02 * jax.random.normal(k, s)).astype(jnp.float32)

    params = {
        # per-marker graph encoder stand-in
        'enc_w': norm(ks[0], (M, F, D)),
        'enc_b': jnp.zeros((M, 1, D), jnp.float32),
        # concat-aggregator MLP: in = M*D (stored as per-marker blocks), out = D
        'aw0': norm(ks[1], (M, D, H)),
        'ab0': jnp.zeros((1, H), jnp.float32),
        'awh': norm(ks[2], (depth, H, H)),
        'abh': jnp.zeros((depth, 1, H), jnp.float32),
        'awo': norm(ks[3], (H, D)),
        'abo': jnp.zeros((1, D), jnp.float32),
        # per-task heads: MLP(D -> H -> C)
        'hw0': norm(ks[4], (T, D, H)),
        'hb0': jnp.zeros((T, 1, H), jnp.float32),
        'hw1': norm(ks[5], (T, H, C)),
        'hb1': jnp.zeros((T, 1, C), jnp.float32),
    }

    node_feats, adjs, masks = [], [], []
    for i in range(M):
        nf = jax.random.normal(ks[6 + i], (B, N, F)).astype(jnp.float32)
        a = jax.random.uniform(ks[9 + i], (B, N, N)).astype(jnp.float32)
        a = 0.5 * (a + jnp.swapaxes(a, -1, -2))            # symmetric adjacency
        mk = (jax.random.uniform(ks[12 + i], (B, N)) > 0.2).astype(jnp.float32)
        node_feats.append(nf)
        adjs.append(a)
        masks.append(mk)

    missing_markers_index = jnp.array([[1.0, 1.0, 0.0],
                                       [1.0, 0.0, 1.0]], dtype=jnp.float32)

    x, mc_losses, ortho_losses = graph_transformer_late_fusion(
        node_feats, adjs, masks, missing_markers_index, params)

    for t in range(T):
        jax.block_until_ready(x[t])
        assert x[t].shape == (B, C)
    assert len(mc_losses) == M and len(ortho_losses) == M
    print("KERNEL_OK")
</pallas_src>

<mosaic_0001>
module attributes {stable_mosaic.version = 11 : i64} {
  func.func @fused_kernel(%arg0: memref<3x2x8x16xbf16, #tpu.memory_space<vmem>>, %arg1: memref<3x2x8x8xbf16, #tpu.memory_space<vmem>>, %arg2: memref<3x2x8xf32, #tpu.memory_space<vmem>>, %arg3: memref<2x3xf32, #tpu.memory_space<vmem>>, %arg4: memref<3x16x32xbf16, #tpu.memory_space<vmem>>, %arg5: memref<3x1x32xf32, #tpu.memory_space<vmem>>, %arg6: memref<96x64xf32, #tpu.memory_space<vmem>>, %arg7: memref<1x64xf32, #tpu.memory_space<vmem>>, %arg8: memref<1x64x64xf32, #tpu.memory_space<vmem>>, %arg9: memref<1x1x64xf32, #tpu.memory_space<vmem>>, %arg10: memref<64x32xf32, #tpu.memory_space<vmem>>, %arg11: memref<1x32xf32, #tpu.memory_space<vmem>>, %arg12: memref<32x128xf32, #tpu.memory_space<vmem>>, %arg13: memref<1x128xf32, #tpu.memory_space<vmem>>, %arg14: memref<2x64x4xf32, #tpu.memory_space<vmem>>, %arg15: memref<2x1x4xf32, #tpu.memory_space<vmem>>, %arg16: memref<2x8xf32, #tpu.memory_space<vmem>>) attributes {dimension_semantics = [], scalar_prefetch = 0 : i64, scratch_operands = 0 : i64, tpu.core_type = #tpu.core_type<tc>} {
    %c0 = arith.constant 0 : index
    %c0_0 = arith.constant 0 : index
    %c0_1 = arith.constant 0 : index
    %c0_2 = arith.constant 0 : index
    %0 = vector.load %arg0[%c0, %c0_0, %c0_1, %c0_2] : memref<3x2x8x16xbf16, #tpu.memory_space<vmem>>, vector<1x2x8x16xbf16>
    %1 = vector.shape_cast %0 : vector<1x2x8x16xbf16> to vector<2x8x16xbf16>
    %c0_3 = arith.constant 0 : index
    %c0_4 = arith.constant 0 : index
    %c0_5 = arith.constant 0 : index
    %c0_6 = arith.constant 0 : index
    %2 = vector.load %arg1[%c0_3, %c0_4, %c0_5, %c0_6] : memref<3x2x8x8xbf16, #tpu.memory_space<vmem>>, vector<1x2x8x8xbf16>
    %3 = vector.shape_cast %2 : vector<1x2x8x8xbf16> to vector<2x8x8xbf16>
    %c0_7 = arith.constant 0 : index
    %c0_8 = arith.constant 0 : index
    %c0_9 = arith.constant 0 : index
    %4 = vector.load %arg2[%c0_7, %c0_8, %c0_9] : memref<3x2x8xf32, #tpu.memory_space<vmem>>, vector<1x2x8xf32>
    %5 = vector.shape_cast %4 : vector<1x2x8xf32> to vector<2x8xf32>
    %6 = vector.shape_cast %1 : vector<2x8x16xbf16> to vector<16x16xbf16>
    %c0_10 = arith.constant 0 : index
    %c0_11 = arith.constant 0 : index
    %c0_12 = arith.constant 0 : index
    %7 = vector.load %arg4[%c0_10, %c0_11, %c0_12] : memref<3x16x32xbf16, #tpu.memory_space<vmem>>, vector<1x16x32xbf16>
    %8 = vector.shape_cast %7 : vector<1x16x32xbf16> to vector<16x32xbf16>
    %cst = arith.constant dense<0.000000e+00> : vector<16x32xf32>
    %9 = tpu.matmul %6, %8, %cst {dimension_numbers = #tpu.dot_dimension_numbers<[1], [0], [0], [1], [0, 0, 1, 1], [], []>} : vector<16x16xbf16>, vector<16x32xbf16>, vector<16x32xf32> -> vector<16x32xf32>
    %10 = vector.shape_cast %9 : vector<16x32xf32> to vector<2x8x32xf32>
    %11 = arith.truncf %10 : vector<2x8x32xf32> to vector<2x8x32xbf16>
    "tpu.trace_start"() <{level = 10 : i32, message = "bij,bjd->bid"}> : () -> ()
    %cst_13 = arith.constant dense<0.000000e+00> : vector<2x8x32xf32>
    %12 = tpu.matmul %3, %11, %cst_13 {dimension_numbers = #tpu.dot_dimension_numbers<[2], [1], [1], [2], [0, 0, 0, 1, 1, 2], [0], [0]>} : vector<2x8x8xbf16>, vector<2x8x32xbf16>, vector<2x8x32xf32> -> vector<2x8x32xf32>
    "tpu.trace_stop"() : () -> ()
    %c0_14 = arith.constant 0 : index
    %c0_15 = arith.constant 0 : index
    %c0_16 = arith.constant 0 : index
    %13 = vector.load %arg5[%c0_14, %c0_15, %c0_16] : memref<3x1x32xf32, #tpu.memory_space<vmem>>, vector<1x1x32xf32>
    %14 = vector.shape_cast %13 : vector<1x1x32xf32> to vector<1x32xf32>
    %15 = vector.shape_cast %14 : vector<1x32xf32> to vector<1x1x32xf32>
    %16 = vector.broadcast %15 : vector<1x1x32xf32> to vector<2x8x32xf32>
    %17 = arith.addf %12, %16 : vector<2x8x32xf32>
    %cst_17 = arith.constant 0.000000e+00 : f32
    %18 = vector.broadcast %cst_17 : f32 to vector<2x8x32xf32>
    %19 = arith.maximumf %17, %18 : vector<2x8x32xf32>
    %20 = vector.shape_cast %5 : vector<2x8xf32> to vector<2x8x1xf32>
    %21 = vector.broadcast %20 : vector<2x8x1xf32> to vector<2x8x32xf32>
    %22 = arith.mulf %19, %21 : vector<2x8x32xf32>
    %cst_18 = arith.constant dense<0.000000e+00> : vector<2x32xf32>
    %23 = vector.multi_reduction <add>, %22, %cst_18 [1] : vector<2x8x32xf32> to vector<2x32xf32>
    %cst_19 = arith.constant dense<0.000000e+00> : vector<2xf32>
    %24 = vector.multi_reduction <add>, %5, %cst_19 [1] : vector<2x8xf32> to vector<2xf32>
    %25 = vector.shape_cast %24 : vector<2xf32> to vector<2x1xf32>
    %cst_20 = arith.constant 1.000000e+00 : f32
    %26 = vector.broadcast %cst_20 : f32 to vector<2x1xf32>
    %27 = arith.maximumf %25, %26 : vector<2x1xf32>
    %28 = vector.broadcast %27 : vector<2x1xf32> to vector<2x32xf32>
    %29 = arith.divf %23, %28 : vector<2x32xf32>
    %c0_21 = arith.constant 0 : index
    %c0_22 = arith.constant 0 : index
    %30 = vector.load %arg3[%c0_21, %c0_22] : memref<2x3xf32, #tpu.memory_space<vmem>>, vector<2x1xf32>
    %31 = vector.broadcast %30 : vector<2x1xf32> to vector<2x32xf32>
    %32 = arith.mulf %29, %31 : vector<2x32xf32>
    %c1 = arith.constant 1 : index
    %c0_23 = arith.constant 0 : index
    %c0_24 = arith.constant 0 : index
    %c0_25 = arith.constant 0 : index
    %33 = vector.load %arg0[%c1, %c0_23, %c0_24, %c0_25] : memref<3x2x8x16xbf16, #tpu.memory_space<vmem>>, vector<1x2x8x16xbf16>
    %34 = vector.shape_cast %33 : vector<1x2x8x16xbf16> to vector<2x8x16xbf16>
    %c1_26 = arith.constant 1 : index
    %c0_27 = arith.constant 0 : index
    %c0_28 = arith.constant 0 : index
    %c0_29 = arith.constant 0 : index
    %35 = vector.load %arg1[%c1_26, %c0_27, %c0_28, %c0_29] : memref<3x2x8x8xbf16, #tpu.memory_space<vmem>>, vector<1x2x8x8xbf16>
    %36 = vector.shape_cast %35 : vector<1x2x8x8xbf16> to vector<2x8x8xbf16>
    %c1_30 = arith.constant 1 : index
    %c0_31 = arith.constant 0 : index
    %c0_32 = arith.constant 0 : index
    %37 = vector.load %arg2[%c1_30, %c0_31, %c0_32] : memref<3x2x8xf32, #tpu.memory_space<vmem>>, vector<1x2x8xf32>
    %38 = vector.shape_cast %37 : vector<1x2x8xf32> to vector<2x8xf32>
    %39 = vector.shape_cast %34 : vector<2x8x16xbf16> to vector<16x16xbf16>
    %c1_33 = arith.constant 1 : index
    %c0_34 = arith.constant 0 : index
    %c0_35 = arith.constant 0 : index
    %40 = vector.load %arg4[%c1_33, %c0_34, %c0_35] : memref<3x16x32xbf16, #tpu.memory_space<vmem>>, vector<1x16x32xbf16>
    %41 = vector.shape_cast %40 : vector<1x16x32xbf16> to vector<16x32xbf16>
    %cst_36 = arith.constant dense<0.000000e+00> : vector<16x32xf32>
    %42 = tpu.matmul %39, %41, %cst_36 {dimension_numbers = #tpu.dot_dimension_numbers<[1], [0], [0], [1], [0, 0, 1, 1], [], []>} : vector<16x16xbf16>, vector<16x32xbf16>, vector<16x32xf32> -> vector<16x32xf32>
    %43 = vector.shape_cast %42 : vector<16x32xf32> to vector<2x8x32xf32>
    %44 = arith.truncf %43 : vector<2x8x32xf32> to vector<2x8x32xbf16>
    "tpu.trace_start"() <{level = 10 : i32, message = "bij,bjd->bid"}> : () -> ()
    %cst_37 = arith.constant dense<0.000000e+00> : vector<2x8x32xf32>
    %45 = tpu.matmul %36, %44, %cst_37 {dimension_numbers = #tpu.dot_dimension_numbers<[2], [1], [1], [2], [0, 0, 0, 1, 1, 2], [0], [0]>} : vector<2x8x8xbf16>, vector<2x8x32xbf16>, vector<2x8x32xf32> -> vector<2x8x32xf32>
    "tpu.trace_stop"() : () -> ()
    %c1_38 = arith.constant 1 : index
    %c0_39 = arith.constant 0 : index
    %c0_40 = arith.constant 0 : index
    %46 = vector.load %arg5[%c1_38, %c0_39, %c0_40] : memref<3x1x32xf32, #tpu.memory_space<vmem>>, vector<1x1x32xf32>
    %47 = vector.shape_cast %46 : vector<1x1x32xf32> to vector<1x32xf32>
    %48 = vector.shape_cast %47 : vector<1x32xf32> to vector<1x1x32xf32>
    %49 = vector.broadcast %48 : vector<1x1x32xf32> to vector<2x8x32xf32>
    %50 = arith.addf %45, %49 : vector<2x8x32xf32>
    %cst_41 = arith.constant 0.000000e+00 : f32
    %51 = vector.broadcast %cst_41 : f32 to vector<2x8x32xf32>
    %52 = arith.maximumf %50, %51 : vector<2x8x32xf32>
    %53 = vector.shape_cast %38 : vector<2x8xf32> to vector<2x8x1xf32>
    %54 = vector.broadcast %53 : vector<2x8x1xf32> to vector<2x8x32xf32>
    %55 = arith.mulf %52, %54 : vector<2x8x32xf32>
    %cst_42 = arith.constant dense<0.000000e+00> : vector<2x32xf32>
    %56 = vector.multi_reduction <add>, %55, %cst_42 [1] : vector<2x8x32xf32> to vector<2x32xf32>
    %cst_43 = arith.constant dense<0.000000e+00> : vector<2xf32>
    %57 = vector.multi_reduction <add>, %38, %cst_43 [1] : vector<2x8xf32> to vector<2xf32>
    %58 = vector.shape_cast %57 : vector<2xf32> to vector<2x1xf32>
    %cst_44 = arith.constant 1.000000e+00 : f32
    %59 = vector.broadcast %cst_44 : f32 to vector<2x1xf32>
    %60 = arith.maximumf %58, %59 : vector<2x1xf32>
    %61 = vector.broadcast %60 : vector<2x1xf32> to vector<2x32xf32>
    %62 = arith.divf %56, %61 : vector<2x32xf32>
    %c0_45 = arith.constant 0 : index
    %c1_46 = arith.constant 1 : index
    %63 = vector.load %arg3[%c0_45, %c1_46] : memref<2x3xf32, #tpu.memory_space<vmem>>, vector<2x1xf32>
    %64 = vector.broadcast %63 : vector<2x1xf32> to vector<2x32xf32>
    %65 = arith.mulf %62, %64 : vector<2x32xf32>
    %c2 = arith.constant 2 : index
    %c0_47 = arith.constant 0 : index
    %c0_48 = arith.constant 0 : index
    %c0_49 = arith.constant 0 : index
    %66 = vector.load %arg0[%c2, %c0_47, %c0_48, %c0_49] : memref<3x2x8x16xbf16, #tpu.memory_space<vmem>>, vector<1x2x8x16xbf16>
    %67 = vector.shape_cast %66 : vector<1x2x8x16xbf16> to vector<2x8x16xbf16>
    %c2_50 = arith.constant 2 : index
    %c0_51 = arith.constant 0 : index
    %c0_52 = arith.constant 0 : index
    %c0_53 = arith.constant 0 : index
    %68 = vector.load %arg1[%c2_50, %c0_51, %c0_52, %c0_53] : memref<3x2x8x8xbf16, #tpu.memory_space<vmem>>, vector<1x2x8x8xbf16>
    %69 = vector.shape_cast %68 : vector<1x2x8x8xbf16> to vector<2x8x8xbf16>
    %c2_54 = arith.constant 2 : index
    %c0_55 = arith.constant 0 : index
    %c0_56 = arith.constant 0 : index
    %70 = vector.load %arg2[%c2_54, %c0_55, %c0_56] : memref<3x2x8xf32, #tpu.memory_space<vmem>>, vector<1x2x8xf32>
    %71 = vector.shape_cast %70 : vector<1x2x8xf32> to vector<2x8xf32>
    %72 = vector.shape_cast %67 : vector<2x8x16xbf16> to vector<16x16xbf16>
    %c2_57 = arith.constant 2 : index
    %c0_58 = arith.constant 0 : index
    %c0_59 = arith.constant 0 : index
    %73 = vector.load %arg4[%c2_57, %c0_58, %c0_59] : memref<3x16x32xbf16, #tpu.memory_space<vmem>>, vector<1x16x32xbf16>
    %74 = vector.shape_cast %73 : vector<1x16x32xbf16> to vector<16x32xbf16>
    %cst_60 = arith.constant dense<0.000000e+00> : vector<16x32xf32>
    %75 = tpu.matmul %72, %74, %cst_60 {dimension_numbers = #tpu.dot_dimension_numbers<[1], [0], [0], [1], [0, 0, 1, 1], [], []>} : vector<16x16xbf16>, vector<16x32xbf16>, vector<16x32xf32> -> vector<16x32xf32>
    %76 = vector.shape_cast %75 : vector<16x32xf32> to vector<2x8x32xf32>
    %77 = arith.truncf %76 : vector<2x8x32xf32> to vector<2x8x32xbf16>
    "tpu.trace_start"() <{level = 10 : i32, message = "bij,bjd->bid"}> : () -> ()
    %cst_61 = arith.constant dense<0.000000e+00> : vector<2x8x32xf32>
    %78 = tpu.matmul %69, %77, %cst_61 {dimension_numbers = #tpu.dot_dimension_numbers<[2], [1], [1], [2], [0, 0, 0, 1, 1, 2], [0], [0]>} : vector<2x8x8xbf16>, vector<2x8x32xbf16>, vector<2x8x32xf32> -> vector<2x8x32xf32>
    "tpu.trace_stop"() : () -> ()
    %c2_62 = arith.constant 2 : index
    %c0_63 = arith.constant 0 : index
    %c0_64 = arith.constant 0 : index
    %79 = vector.load %arg5[%c2_62, %c0_63, %c0_64] : memref<3x1x32xf32, #tpu.memory_space<vmem>>, vector<1x1x32xf32>
    %80 = vector.shape_cast %79 : vector<1x1x32xf32> to vector<1x32xf32>
    %81 = vector.shape_cast %80 : vector<1x32xf32> to vector<1x1x32xf32>
    %82 = vector.broadcast %81 : vector<1x1x32xf32> to vector<2x8x32xf32>
    %83 = arith.addf %78, %82 : vector<2x8x32xf32>
    %cst_65 = arith.constant 0.000000e+00 : f32
    %84 = vector.broadcast %cst_65 : f32 to vector<2x8x32xf32>
    %85 = arith.maximumf %83, %84 : vector<2x8x32xf32>
    %86 = vector.shape_cast %71 : vector<2x8xf32> to vector<2x8x1xf32>
    %87 = vector.broadcast %86 : vector<2x8x1xf32> to vector<2x8x32xf32>
    %88 = arith.mulf %85, %87 : vector<2x8x32xf32>
    %cst_66 = arith.constant dense<0.000000e+00> : vector<2x32xf32>
    %89 = vector.multi_reduction <add>, %88, %cst_66 [1] : vector<2x8x32xf32> to vector<2x32xf32>
    %cst_67 = arith.constant dense<0.000000e+00> : vector<2xf32>
    %90 = vector.multi_reduction <add>, %71, %cst_67 [1] : vector<2x8xf32> to vector<2xf32>
    %91 = vector.shape_cast %90 : vector<2xf32> to vector<2x1xf32>
    %cst_68 = arith.constant 1.000000e+00 : f32
    %92 = vector.broadcast %cst_68 : f32 to vector<2x1xf32>
    %93 = arith.maximumf %91, %92 : vector<2x1xf32>
    %94 = vector.broadcast %93 : vector<2x1xf32> to vector<2x32xf32>
    %95 = arith.divf %89, %94 : vector<2x32xf32>
    %c0_69 = arith.constant 0 : index
    %c2_70 = arith.constant 2 : index
    %96 = vector.load %arg3[%c0_69, %c2_70] : memref<2x3xf32, #tpu.memory_space<vmem>>, vector<2x1xf32>
    %97 = vector.broadcast %96 : vector<2x1xf32> to vector<2x32xf32>
    %98 = arith.mulf %95, %97 : vector<2x32xf32>
    %99 = tpu.concatenate %32, %65, %98 in 1 : vector<2x32xf32>, vector<2x32xf32>, vector<2x32xf32> -> vector<2x96xf32>
    %c0_71 = arith.constant 0 : index
    %c0_72 = arith.constant 0 : index
    %100 = vector.load %arg6[%c0_71, %c0_72] : memref<96x64xf32, #tpu.memory_space<vmem>>, vector<96x64xf32>
    %cst_73 = arith.constant dense<0.000000e+00> : vector<2x64xf32>
    %101 = tpu.matmul %99, %100, %cst_73 {dimension_numbers = #tpu.dot_dimension_numbers<[1], [0], [0], [1], [0, 0, 1, 1], [], []>} : vector<2x96xf32>, vector<96x64xf32>, vector<2x64xf32> -> vector<2x64xf32>
    %c0_74 = arith.constant 0 : index
    %c0_75 = arith.constant 0 : index
    %102 = vector.load %arg7[%c0_74, %c0_75] : memref<1x64xf32, #tpu.memory_space<vmem>>, vector<1x64xf32>
    %103 = vector.broadcast %102 : vector<1x64xf32> to vector<2x64xf32>
    %104 = arith.addf %101, %103 : vector<2x64xf32>
    %105 = arith.mulf %104, %104 : vector<2x64xf32>
    %106 = arith.mulf %104, %105 : vector<2x64xf32>
    %cst_76 = arith.constant 4.471500e-02 : f32
    %107 = vector.broadcast %cst_76 : f32 to vector<2x64xf32>
    %108 = arith.mulf %107, %106 : vector<2x64xf32>
    %109 = arith.addf %104, %108 : vector<2x64xf32>
    %cst_77 = arith.constant 0.797884583 : f32
    %110 = vector.broadcast %cst_77 : f32 to vector<2x64xf32>
    %111 = arith.mulf %110, %109 : vector<2x64xf32>
    %112 = math.tanh %111 : vector<2x64xf32>
    %cst_78 = arith.constant 1.000000e+00 : f32
    %113 = vector.broadcast %cst_78 : f32 to vector<2x64xf32>
    %114 = arith.addf %113, %112 : vector<2x64xf32>
    %cst_79 = arith.constant 5.000000e-01 : f32
    %115 = vector.broadcast %cst_79 : f32 to vector<2x64xf32>
    %116 = arith.mulf %115, %114 : vector<2x64xf32>
    %117 = arith.mulf %104, %116 : vector<2x64xf32>
    %c0_80 = arith.constant 0 : index
    %c0_81 = arith.constant 0 : index
    %c0_82 = arith.constant 0 : index
    %118 = vector.load %arg8[%c0_80, %c0_81, %c0_82] : memref<1x64x64xf32, #tpu.memory_space<vmem>>, vector<1x64x64xf32>
    %119 = vector.shape_cast %118 : vector<1x64x64xf32> to vector<64x64xf32>
    %cst_83 = arith.constant dense<0.000000e+00> : vector<2x64xf32>
    %120 = tpu.matmul %117, %119, %cst_83 {dimension_numbers = #tpu.dot_dimension_numbers<[1], [0], [0], [1], [0, 0, 1, 1], [], []>} : vector<2x64xf32>, vector<64x64xf32>, vector<2x64xf32> -> vector<2x64xf32>
    %c0_84 = arith.constant 0 : index
    %c0_85 = arith.constant 0 : index
    %c0_86 = arith.constant 0 : index
    %121 = vector.load %arg9[%c0_84, %c0_85, %c0_86] : memref<1x1x64xf32, #tpu.memory_space<vmem>>, vector<1x1x64xf32>
    %122 = vector.shape_cast %121 : vector<1x1x64xf32> to vector<1x64xf32>
    %123 = vector.broadcast %122 : vector<1x64xf32> to vector<2x64xf32>
    %124 = arith.addf %120, %123 : vector<2x64xf32>
    %125 = arith.mulf %124, %124 : vector<2x64xf32>
    %126 = arith.mulf %124, %125 : vector<2x64xf32>
    %cst_87 = arith.constant 4.471500e-02 : f32
    %127 = vector.broadcast %cst_87 : f32 to vector<2x64xf32>
    %128 = arith.mulf %127, %126 : vector<2x64xf32>
    %129 = arith.addf %124, %128 : vector<2x64xf32>
    %cst_88 = arith.constant 0.797884583 : f32
    %130 = vector.broadcast %cst_88 : f32 to vector<2x64xf32>
    %131 = arith.mulf %130, %129 : vector<2x64xf32>
    %132 = math.tanh %131 : vector<2x64xf32>
    %cst_89 = arith.constant 1.000000e+00 : f32
    %133 = vector.broadcast %cst_89 : f32 to vector<2x64xf32>
    %134 = arith.addf %133, %132 : vector<2x64xf32>
    %cst_90 = arith.constant 5.000000e-01 : f32
    %135 = vector.broadcast %cst_90 : f32 to vector<2x64xf32>
    %136 = arith.mulf %135, %134 : vector<2x64xf32>
    %137 = arith.mulf %124, %136 : vector<2x64xf32>
    %c0_91 = arith.constant 0 : index
    %c0_92 = arith.constant 0 : index
    %138 = vector.load %arg10[%c0_91, %c0_92] : memref<64x32xf32, #tpu.memory_space<vmem>>, vector<64x32xf32>
    %cst_93 = arith.constant dense<0.000000e+00> : vector<2x32xf32>
    %139 = tpu.matmul %137, %138, %cst_93 {dimension_numbers = #tpu.dot_dimension_numbers<[1], [0], [0], [1], [0, 0, 1, 1], [], []>} : vector<2x64xf32>, vector<64x32xf32>, vector<2x32xf32> -> vector<2x32xf32>
    %c0_94 = arith.constant 0 : index
    %c0_95 = arith.constant 0 : index
    %140 = vector.load %arg11[%c0_94, %c0_95] : memref<1x32xf32, #tpu.memory_space<vmem>>, vector<1x32xf32>
    %141 = vector.broadcast %140 : vector<1x32xf32> to vector<2x32xf32>
    %142 = arith.addf %139, %141 : vector<2x32xf32>
    %c0_96 = arith.constant 0 : index
    %c0_97 = arith.constant 0 : index
    %143 = vector.load %arg12[%c0_96, %c0_97] : memref<32x128xf32, #tpu.memory_space<vmem>>, vector<32x128xf32>
    %cst_98 = arith.constant dense<0.000000e+00> : vector<2x128xf32>
    %144 = tpu.matmul %142, %143, %cst_98 {dimension_numbers = #tpu.dot_dimension_numbers<[1], [0], [0], [1], [0, 0, 1, 1], [], []>} : vector<2x32xf32>, vector<32x128xf32>, vector<2x128xf32> -> vector<2x128xf32>
    %c0_99 = arith.constant 0 : index
    %c0_100 = arith.constant 0 : index
    %145 = vector.load %arg13[%c0_99, %c0_100] : memref<1x128xf32, #tpu.memory_space<vmem>>, vector<1x128xf32>
    %146 = vector.broadcast %145 : vector<1x128xf32> to vector<2x128xf32>
    %147 = arith.addf %144, %146 : vector<2x128xf32>
    %148 = arith.mulf %147, %147 : vector<2x128xf32>
    %149 = arith.mulf %147, %148 : vector<2x128xf32>
    %cst_101 = arith.constant 4.471500e-02 : f32
    %150 = vector.broadcast %cst_101 : f32 to vector<2x128xf32>
    %151 = arith.mulf %150, %149 : vector<2x128xf32>
    %152 = arith.addf %147, %151 : vector<2x128xf32>
    %cst_102 = arith.constant 0.797884583 : f32
    %153 = vector.broadcast %cst_102 : f32 to vector<2x128xf32>
    %154 = arith.mulf %153, %152 : vector<2x128xf32>
    %155 = math.tanh %154 : vector<2x128xf32>
    %cst_103 = arith.constant 1.000000e+00 : f32
    %156 = vector.broadcast %cst_103 : f32 to vector<2x128xf32>
    %157 = arith.addf %156, %155 : vector<2x128xf32>
    %cst_104 = arith.constant 5.000000e-01 : f32
    %158 = vector.broadcast %cst_104 : f32 to vector<2x128xf32>
    %159 = arith.mulf %158, %157 : vector<2x128xf32>
    %160 = arith.mulf %147, %159 : vector<2x128xf32>
    %161 = vector.extract_strided_slice %160 {offsets = [0, 0], sizes = [2, 64], strides = [1, 1]} : vector<2x128xf32> to vector<2x64xf32>
    %c0_105 = arith.constant 0 : index
    %c0_106 = arith.constant 0 : index
    %c0_107 = arith.constant 0 : index
    %162 = vector.load %arg14[%c0_105, %c0_106, %c0_107] : memref<2x64x4xf32, #tpu.memory_space<vmem>>, vector<1x64x4xf32>
    %163 = vector.shape_cast %162 : vector<1x64x4xf32> to vector<64x4xf32>
    %cst_108 = arith.constant dense<0.000000e+00> : vector<2x4xf32>
    %164 = tpu.matmul %161, %163, %cst_108 {dimension_numbers = #tpu.dot_dimension_numbers<[1], [0], [0], [1], [0, 0, 1, 1], [], []>} : vector<2x64xf32>, vector<64x4xf32>, vector<2x4xf32> -> vector<2x4xf32>
    %c0_109 = arith.constant 0 : index
    %c0_110 = arith.constant 0 : index
    %c0_111 = arith.constant 0 : index
    %165 = vector.load %arg15[%c0_109, %c0_110, %c0_111] : memref<2x1x4xf32, #tpu.memory_space<vmem>>, vector<1x1x4xf32>
    %166 = vector.shape_cast %165 : vector<1x1x4xf32> to vector<1x4xf32>
    %167 = vector.broadcast %166 : vector<1x4xf32> to vector<2x4xf32>
    %168 = arith.addf %164, %167 : vector<2x4xf32>
    %169 = vector.extract_strided_slice %160 {offsets = [0, 64], sizes = [2, 64], strides = [1, 1]} : vector<2x128xf32> to vector<2x64xf32>
    %c1_112 = arith.constant 1 : index
    %c0_113 = arith.constant 0 : index
    %c0_114 = arith.constant 0 : index
    %170 = vector.load %arg14[%c1_112, %c0_113, %c0_114] : memref<2x64x4xf32, #tpu.memory_space<vmem>>, vector<1x64x4xf32>
    %171 = vector.shape_cast %170 : vector<1x64x4xf32> to vector<64x4xf32>
    %cst_115 = arith.constant dense<0.000000e+00> : vector<2x4xf32>
    %172 = tpu.matmul %169, %171, %cst_115 {dimension_numbers = #tpu.dot_dimension_numbers<[1], [0], [0], [1], [0, 0, 1, 1], [], []>} : vector<2x64xf32>, vector<64x4xf32>, vector<2x4xf32> -> vector<2x4xf32>
    %c1_116 = arith.constant 1 : index
    %c0_117 = arith.constant 0 : index
    %c0_118 = arith.constant 0 : index
    %173 = vector.load %arg15[%c1_116, %c0_117, %c0_118] : memref<2x1x4xf32, #tpu.memory_space<vmem>>, vector<1x1x4xf32>
    %174 = vector.shape_cast %173 : vector<1x1x4xf32> to vector<1x4xf32>
    %175 = vector.broadcast %174 : vector<1x4xf32> to vector<2x4xf32>
    %176 = arith.addf %172, %175 : vector<2x4xf32>
    %177 = tpu.concatenate %168, %176 in 1 : vector<2x4xf32>, vector<2x4xf32> -> vector<2x8xf32>
    %c0_119 = arith.constant 0 : index
    %c0_120 = arith.constant 0 : index
    %178 = vector.load %arg16[%c0_119, %c0_120] : memref<2x8xf32, #tpu.memory_space<vmem>>, vector<2x8xf32>
    tpu.vector_store %arg16[%c0_119, %c0_120], %177 {strides = array<i32>} : memref<2x8xf32, #tpu.memory_space<vmem>>, vector<2x8xf32>,
    return
  }
}

</mosaic_0001>

<llo_original>
// kernel: tpu_custom_call.1
$region0: #{tpu_custom_call.1}
  #allocation0 [shape = 'u32[]', space=smem, size = 0x4, offset = 0x4, fixed_abs, tag = 'smem constant byte address 0x4 - core index']
  #allocation1 [shape = 'u32[144,128]{1,0:T(1,128)}', space=vmem, size = 0x12000, scoped, tag = 'internal scratch']
  %s0 = inlined_call_operand.vmem [shape: bf16[3,2,8,16], index: 0, kind: input, shape index: {}]
  %s1 = inlined_call_operand.vmem [shape: bf16[3,2,8,8], index: 1, kind: input, shape index: {}]
  %s2 = inlined_call_operand.vmem [shape: f32[3,2,8], index: 2, kind: input, shape index: {}]
  %s3 = inlined_call_operand.vmem [shape: f32[2,3], index: 3, kind: input, shape index: {}]
  %s4 = inlined_call_operand.vmem [shape: bf16[3,16,32], index: 4, kind: input, shape index: {}]
  %s5 = inlined_call_operand.vmem [shape: f32[3,1,32], index: 5, kind: input, shape index: {}]
  %s6 = inlined_call_operand.vmem [shape: f32[96,64], index: 6, kind: input, shape index: {}]
  %s7 = inlined_call_operand.vmem [shape: f32[1,64], index: 7, kind: input, shape index: {}]
  %s8 = inlined_call_operand.vmem [shape: f32[1,64,64], index: 8, kind: input, shape index: {}]
  %s9 = inlined_call_operand.vmem [shape: f32[1,1,64], index: 9, kind: input, shape index: {}]
  %s10 = inlined_call_operand.vmem [shape: f32[64,32], index: 10, kind: input, shape index: {}]
  %s11 = inlined_call_operand.vmem [shape: f32[1,32], index: 11, kind: input, shape index: {}]
  %s12 = inlined_call_operand.vmem [shape: f32[32,128], index: 12, kind: input, shape index: {}]
  %s13 = inlined_call_operand.vmem [shape: f32[1,128], index: 13, kind: input, shape index: {}]
  %s14 = inlined_call_operand.vmem [shape: f32[2,64,4], index: 14, kind: input, shape index: {}]
  %s15 = inlined_call_operand.vmem [shape: f32[2,1,4], index: 15, kind: input, shape index: {}]
  %s16 = inlined_call_operand.hbm [shape: f32[2,8], index: 16, kind: output, shape index: {}]
  %s17 = sld [smem:[#allocation0]]
  $region74: #{tpu_custom_call.1} parent=0
    _
  %s19 = ssub.s32 1, %s17
  %s20 = scalar_select 0, %s19, %s17
  $region1: #{tpu_custom_call.1} parent=0
    #allocation2 [shape = 'u8[1024]{0}', space=vmem, size = 0x400, scoped, tag = 'output window, operand 0, single buffered']
    #allocation3 [shape = 's32[1]{0}', space=sflag, size = 0x4, scoped, tag = 'scoped memory for tpu_custom_call.1']
    %21 = vsyncpa [#allocation3], 0
    // Predicated region
    $region2: #{tpu_custom_call.1} parent=1 // pred_check
      _
    $region3: #{tpu_custom_call.1} parent=1 // pred_check_branch
      %23 = sbr.rel (0) target = $region5
    $region4: #{tpu_custom_call.1} parent=1 // pred_region
      _
    $region5: #{tpu_custom_call.1} parent=1 // pred_fallthru
      _
    // Predicated region
    $region6: #{tpu_custom_call.1} parent=1 // pred_check
      _
    $region7: #{tpu_custom_call.1} parent=1 // pred_check_branch
      %25 = sbr.rel (0) target = $region9
    $region8: #{tpu_custom_call.1} parent=1 // pred_region
      _
    $region9: #{tpu_custom_call.1} parent=1 // pred_fallthru
      _
    // Predicated region
    $region10: #{tpu_custom_call.1} parent=1 // pred_check
      _
    $region11: #{tpu_custom_call.1} parent=1 // pred_check_branch
      %27 = sbr.rel (0) target = $region13
    $region12: #{tpu_custom_call.1} parent=1 // pred_region
      _
    $region13: #{tpu_custom_call.1} parent=1 // pred_fallthru
      _
    // Predicated region
    $region14: #{tpu_custom_call.1} parent=1 // pred_check
      _
    $region15: #{tpu_custom_call.1} parent=1 // pred_check_branch
      %29 = sbr.rel (0) target = $region17
    $region16: #{tpu_custom_call.1} parent=1 // pred_region
      _
    $region17: #{tpu_custom_call.1} parent=1 // pred_fallthru
      _
    // Predicated region
    $region18: #{tpu_custom_call.1} parent=1 // pred_check
      _
    $region19: #{tpu_custom_call.1} parent=1 // pred_check_branch
      %31 = sbr.rel (0) target = $region21
    $region20: #{tpu_custom_call.1} parent=1 // pred_region
      _
    $region21: #{tpu_custom_call.1} parent=1 // pred_fallthru
      _
    // Predicated region
    $region22: #{tpu_custom_call.1} parent=1 // pred_check
      _
    $region23: #{tpu_custom_call.1} parent=1 // pred_check_branch
      %33 = sbr.rel (0) target = $region25
    $region24: #{tpu_custom_call.1} parent=1 // pred_region
      _
    $region25: #{tpu_custom_call.1} parent=1 // pred_fallthru
      _
    // Predicated region
    $region26: #{tpu_custom_call.1} parent=1 // pred_check
      _
    $region27: #{tpu_custom_call.1} parent=1 // pred_check_branch
      %35 = sbr.rel (0) target = $region29
    $region28: #{tpu_custom_call.1} parent=1 // pred_region
      _
    $region29: #{tpu_custom_call.1} parent=1 // pred_fallthru
      _
    // Predicated region
    $region30: #{tpu_custom_call.1} parent=1 // pred_check
      _
    $region31: #{tpu_custom_call.1} parent=1 // pred_check_branch
      %37 = sbr.rel (0) target = $region33
    $region32: #{tpu_custom_call.1} parent=1 // pred_region
      _
    $region33: #{tpu_custom_call.1} parent=1 // pred_fallthru
      _
    // Predicated region
    $region34: #{tpu_custom_call.1} parent=1 // pred_check
      _
    $region35: #{tpu_custom_call.1} parent=1 // pred_check_branch
      %39 = sbr.rel (0) target = $region37
    $region36: #{tpu_custom_call.1} parent=1 // pred_region
      _
    $region37: #{tpu_custom_call.1} parent=1 // pred_fallthru
      _
    // Predicated region
    $region38: #{tpu_custom_call.1} parent=1 // pred_check
      _
    $region39: #{tpu_custom_call.1} parent=1 // pred_check_branch
      %41 = sbr.rel (0) target = $region41
    $region40: #{tpu_custom_call.1} parent=1 // pred_region
      _
    $region41: #{tpu_custom_call.1} parent=1 // pred_fallthru
      _
    // Predicated region
    $region42: #{tpu_custom_call.1} parent=1 // pred_check
      _
    $region43: #{tpu_custom_call.1} parent=1 // pred_check_branch
      %43 = sbr.rel (0) target = $region45
    $region44: #{tpu_custom_call.1} parent=1 // pred_region
      _
    $region45: #{tpu_custom_call.1} parent=1 // pred_fallthru
      _
    // Predicated region
    $region46: #{tpu_custom_call.1} parent=1 // pred_check
      _
    $region47: #{tpu_custom_call.1} parent=1 // pred_check_branch
      %45 = sbr.rel (0) target = $region49
    $region48: #{tpu_custom_call.1} parent=1 // pred_region
      _
    $region49: #{tpu_custom_call.1} parent=1 // pred_fallthru
      _
    // Predicated region
    $region50: #{tpu_custom_call.1} parent=1 // pred_check
      _
    $region51: #{tpu_custom_call.1} parent=1 // pred_check_branch
      %47 = sbr.rel (0) target = $region53
    $region52: #{tpu_custom_call.1} parent=1 // pred_region
      _
    $region53: #{tpu_custom_call.1} parent=1 // pred_fallthru
      _
    // Predicated region
    $region54: #{tpu_custom_call.1} parent=1 // pred_check
      _
    $region55: #{tpu_custom_call.1} parent=1 // pred_check_branch
      %49 = sbr.rel (0) target = $region57
    $region56: #{tpu_custom_call.1} parent=1 // pred_region
      _
    $region57: #{tpu_custom_call.1} parent=1 // pred_fallthru
      _
    // Predicated region
    $region58: #{tpu_custom_call.1} parent=1 // pred_check
      _
    $region59: #{tpu_custom_call.1} parent=1 // pred_check_branch
      %51 = sbr.rel (0) target = $region61
    $region60: #{tpu_custom_call.1} parent=1 // pred_region
      _
    $region61: #{tpu_custom_call.1} parent=1 // pred_fallthru
      _
    // Predicated region
    $region62: #{tpu_custom_call.1} parent=1 // pred_check
      _
    $region63: #{tpu_custom_call.1} parent=1 // pred_check_branch
      %53 = sbr.rel (0) target = $region65
    $region64: #{tpu_custom_call.1} parent=1 // pred_region
      _
    $region65: #{tpu_custom_call.1} parent=1 // pred_fallthru
      _
    %v55 = vld [vmem:[%s0] sm:$0xf]
    %v56 = vld [vmem:[%s0 + $0x4] sm:$0xf]
    %v57 = vld [vmem:[%s1] sm:$0xf]
    %v58 = vld [vmem:[%s1 + $0x4] sm:$0xf]
    %v59 = vld [vmem:[%s2] sm:$0x3]
    %v60 = vld [vmem:[%s4] sm:$0xf]
    %v61 = vld [vmem:[%s4 + $0x4] sm:$0xf]
    %v64 = vunpack.c.l.b16 %v55
    %v65 = vunpack.c.l.b16 %v56
    %v66 = vpack.c.b16 %v65, %v64
    %v69 = vunpack.c.l.b16 %v60
    %v70 = vunpack.c.l.b16 %v61
    %v71 = vpack.c.b16 %v70, %v69
    %vm73 = vcmask 130048
    %v75 = vsel %vm73, %v66, 0
    %77 = vmatprep.subr.bf16.mxu0 0
    %78 = vmatpush1.bf16.msra.mxu0 %v71
    %79 = vmatprep.subr.bf16.mxu0 0
    %80 = vmatpush1.bf16.msra.mxu0 0
    %81 = vmatprep.subr.bf16.mxu0 0
    %82 = vmatpush1.bf16.msra.mxu0 0
    %83 = vmatprep.subr.bf16.mxu0 0
    %84 = vmatpush1.bf16.msra.mxu0 0
    %85 = vmatprep.subr.bf16.mxu0 0
    %86 = vmatpush1.bf16.msra.mxu0 0
    %87 = vmatprep.subr.bf16.mxu0 0
    %88 = vmatpush1.bf16.msra.mxu0 0
    %89 = vmatprep.subr.bf16.mxu0 0
    %90 = vmatpush1.bf16.msra.mxu0 0
    %91 = vmatprep.subr.bf16.mxu0 0
    %92 = vmatpush1.bf16.msra.mxu0 0
    %93 = vmatprep.subr.bf16.mxu0 0
    %94 = vmatpush1.bf16.msra.mxu0 0
    %95 = vmatprep.subr.bf16.mxu0 0
    %96 = vmatpush1.bf16.msra.mxu0 0
    %97 = vmatprep.subr.bf16.mxu0 0
    %98 = vmatpush1.bf16.msra.mxu0 0
    %99 = vmatprep.subr.bf16.mxu0 0
    %100 = vmatpush1.bf16.msra.mxu0 0
    %101 = vmatprep.subr.bf16.mxu0 0
    %102 = vmatpush1.bf16.msra.mxu0 0
    %103 = vmatprep.subr.bf16.mxu0 0
    %104 = vmatpush1.bf16.msra.mxu0 0
    %105 = vmatprep.subr.bf16.mxu0 0
    %106 = vmatpush1.bf16.msra.mxu0 0
    %107 = vmatprep.subr.bf16.mxu0 0
    %108 = vmatpush1.bf16.msra.mxu0 0
    %109 = vmatprep.mubr.bf16.mxu0 0
    %110 = vmatmul.mubr.bf16.gmra.mrb[0].mxu0 %v75
    %v111 = vpop.f32.mrb[0].mxu0
    %v112 = vadd.f32 0.0, %v111
    %v113 = vpop.f32.mrb[0].mxu0
    %v114 = vpop.f32.mrb[0].mxu0
    %v115 = vadd.f32 0.0, %v114
    %v116 = vpop.f32.mrb[0].mxu0
    %117 = vdwg.mxu0
    %v118 = vpack.c.bf16 %v112, %v112
    %v119 = vpack.c.bf16 %v115, %v115
    %v120 = vld [vmem:[%s5] sm:$0x1]
    %v122 = vlaneseq
    %v123 = vshrl.u32 %v122, 7
    %v124 = vsub.s32 0, %v123
    %v125 = vrot.slane %v120, %v124
    %vm127 = vcmask 64512
    %v129 = vsel %vm127, %v57, 0
    %vm131 = vcmask 1043456
    %v133 = vsel %vm131, %v118, 0
    %135 = vmatprep.subr.bf16.mxu0 0
    %136 = vmatpush1.bf16.msra.mxu0 %v133
    %137 = vmatprep.subr.bf16.mxu0 0
    %138 = vmatpush1.bf16.msra.mxu0 0
    %139 = vmatprep.subr.bf16.mxu0 0
    %140 = vmatpush1.bf16.msra.mxu0 0
    %141 = vmatprep.subr.bf16.mxu0 0
    %142 = vmatpush1.bf16.msra.mxu0 0
    %143 = vmatprep.subr.bf16.mxu0 0
    %144 = vmatpush1.bf16.msra.mxu0 0
    %145 = vmatprep.subr.bf16.mxu0 0
    %146 = vmatpush1.bf16.msra.mxu0 0
    %147 = vmatprep.subr.bf16.mxu0 0
    %148 = vmatpush1.bf16.msra.mxu0 0
    %149 = vmatprep.subr.bf16.mxu0 0
    %150 = vmatpush1.bf16.msra.mxu0 0
    %151 = vmatprep.subr.bf16.mxu0 0
    %152 = vmatpush1.bf16.msra.mxu0 0
    %153 = vmatprep.subr.bf16.mxu0 0
    %154 = vmatpush1.bf16.msra.mxu0 0
    %155 = vmatprep.subr.bf16.mxu0 0
    %156 = vmatpush1.bf16.msra.mxu0 0
    %157 = vmatprep.subr.bf16.mxu0 0
    %158 = vmatpush1.bf16.msra.mxu0 0
    %159 = vmatprep.subr.bf16.mxu0 0
    %160 = vmatpush1.bf16.msra.mxu0 0
    %161 = vmatprep.subr.bf16.mxu0 0
    %162 = vmatpush1.bf16.msra.mxu0 0
    %163 = vmatprep.subr.bf16.mxu0 0
    %164 = vmatpush1.bf16.msra.mxu0 0
    %165 = vmatprep.subr.bf16.mxu0 0
    %166 = vmatpush1.bf16.msra.mxu0 0
    %167 = vmatprep.mubr.bf16.mxu0 0
    %168 = vmatmul.mubr.bf16.gmra.mrb[0].mxu0 %v129
    %v169 = vpop.f32.mrb[0].mxu0
    %v170 = vadd.f32 %v125, %v169
    %v171 = vpop.f32.mrb[0].mxu0
    %v172 = vpop.f32.mrb[0].mxu0
    %v173 = vpop.f32.mrb[0].mxu0
    %174 = vdwg.mxu0
    %v176 = vsel %vm127, %v58, 0
    %v179 = vsel %vm131, %v119, 0
    %181 = vmatprep.subr.bf16.mxu0 0
    %182 = vmatpush1.bf16.msra.mxu0 %v179
    %183 = vmatprep.subr.bf16.mxu0 0
    %184 = vmatpush1.bf16.msra.mxu0 0
    %185 = vmatprep.subr.bf16.mxu0 0
    %186 = vmatpush1.bf16.msra.mxu0 0
    %187 = vmatprep.subr.bf16.mxu0 0
    %188 = vmatpush1.bf16.msra.mxu0 0
    %189 = vmatprep.subr.bf16.mxu0 0
    %190 = vmatpush1.bf16.msra.mxu0 0
    %191 = vmatprep.subr.bf16.mxu0 0
    %192 = vmatpush1.bf16.msra.mxu0 0
    %193 = vmatprep.subr.bf16.mxu0 0
    %194 = vmatpush1.bf16.msra.mxu0 0
    %195 = vmatprep.subr.bf16.mxu0 0
    %196 = vmatpush1.bf16.msra.mxu0 0
    %197 = vmatprep.subr.bf16.mxu0 0
    %198 = vmatpush1.bf16.msra.mxu0 0
    %199 = vmatprep.subr.bf16.mxu0 0
    %200 = vmatpush1.bf16.msra.mxu0 0
    %201 = vmatprep.subr.bf16.mxu0 0
    %202 = vmatpush1.bf16.msra.mxu0 0
    %203 = vmatprep.subr.bf16.mxu0 0
    %204 = vmatpush1.bf16.msra.mxu0 0
    %205 = vmatprep.subr.bf16.mxu0 0
    %206 = vmatpush1.bf16.msra.mxu0 0
    %207 = vmatprep.subr.bf16.mxu0 0
    %208 = vmatpush1.bf16.msra.mxu0 0
    %209 = vmatprep.subr.bf16.mxu0 0
    %210 = vmatpush1.bf16.msra.mxu0 0
    %211 = vmatprep.subr.bf16.mxu0 0
    %212 = vmatpush1.bf16.msra.mxu0 0
    %213 = vmatprep.mubr.bf16.mxu0 0
    %214 = vmatmul.mubr.bf16.gmra.mrb[0].mxu0 %v176
    %v215 = vpop.f32.mrb[0].mxu0
    %v216 = vadd.f32 %v125, %v215
    %v217 = vpop.f32.mrb[0].mxu0
    %v218 = vpop.f32.mrb[0].mxu0
    %v219 = vpop.f32.mrb[0].mxu0
    %220 = vdwg.mxu0
    %v221 = vmax.f32 %v170, 0.0
    %v222 = vmax.f32 %v216, 0.0
    %v223 = vlaneseq
    %v224 = vshrl.u32 %v223, 7
    %v225 = vsub.s32 0, %v224
    %v226 = vrot.slane %v59, %v225
    %228 = vbcast.lane.b32.xlu0 %v226, 256
    %v229 = vpop.permute.xlu0 %228
    %v230 = vlaneseq
    %v231 = vshrl.u32 %v230, 7
    %v232 = vsub.s32 1, %v231
    %v233 = vrot.slane %v59, %v232
    %235 = vbcast.lane.b32.xlu0 %v233, 256
    %v236 = vpop.permute.xlu0 %235
    %v237 = vmul.f32 %v221, %v229
    %v238 = vmul.f32 %v222, %v236
    %vm239 = vcmask 261120
    %v240 = vsel %vm239, %v237, 0.0
    %v241 = vrot.slane %v240, 4
    %v242 = vadd.f32 %v240, %v241
    %v243 = vrot.slane %v242, 2
    %v244 = vadd.f32 %v242, %v243
    %v245 = vrot.slane %v244, 1
    %v246 = vadd.f32 %v244, %v245
    %v247 = vsel %vm239, %v238, 0.0
    %v248 = vrot.slane %v247, 4
    %v249 = vadd.f32 %v247, %v248
    %v250 = vrot.slane %v249, 2
    %v251 = vadd.f32 %v249, %v250
    %v252 = vrot.slane %v251, 1
    %v253 = vadd.f32 %v251, %v252
    %vm254 = vcmask 58368
    %v255 = vsel %vm254, %v59, 0.0
    %256 = vadd.xlane.f32.xlu0 %v255
    %v257 = vpop.xlane.xlu0 %256
    %v258 = vmax.f32 %v257, 1.0
    %v260 = vrot.slane %v258, 1
    %v263 = vrcp.pop %v258
    %v264 = vmul.f32 %v246, %v263
    %v265 = vrcp.pop %v260
    %v266 = vmul.f32 %v253, %v265
    %v267 = vld [vmem:[%s3] sm:$0x3]
    %269 = vset.pattern.permute.xlu0 0
    %270 = vperm.xlu0 %269, %v267
    %v271 = vpop.permute.xlu0 %270
    %v272 = vrot.slane %v271, 1
    %v275 = vmul.f32 %v264, %v271
    %v276 = vmul.f32 %v266, %v272
    %s277 = scalar_lea.vmem %s0, 8
    %v278 = vld [vmem:[%s277] sm:$0xf]
    %v279 = vld [vmem:[%s277 + $0x4] sm:$0xf]
    %s280 = scalar_lea.vmem %s1, 8
    %v281 = vld [vmem:[%s280] sm:$0xf]
    %v282 = vld [vmem:[%s280 + $0x4] sm:$0xf]
    %s283 = scalar_lea.vmem %s2, 2
    %v284 = vld [vmem:[%s283] sm:$0x3]
    %s285 = scalar_lea.vmem %s4, 8
    %v286 = vld [vmem:[%s285] sm:$0xf]
    %v287 = vld [vmem:[%s285 + $0x4] sm:$0xf]
    %v290 = vunpack.c.l.b16 %v278
    %v291 = vunpack.c.l.b16 %v279
    %v292 = vpack.c.b16 %v291, %v290
    %v295 = vunpack.c.l.b16 %v286
    %v296 = vunpack.c.l.b16 %v287
    %v297 = vpack.c.b16 %v296, %v295
    %v300 = vsel %vm73, %v292, 0
    %302 = vmatprep.subr.bf16.mxu0 0
    %303 = vmatpush1.bf16.msra.mxu0 %v297
    %304 = vmatprep.subr.bf16.mxu0 0
    %305 = vmatpush1.bf16.msra.mxu0 0
    %306 = vmatprep.subr.bf16.mxu0 0
    %307 = vmatpush1.bf16.msra.mxu0 0
    %308 = vmatprep.subr.bf16.mxu0 0
    %309 = vmatpush1.bf16.msra.mxu0 0
    %310 = vmatprep.subr.bf16.mxu0 0
    %311 = vmatpush1.bf16.msra.mxu0 0
    %312 = vmatprep.subr.bf16.mxu0 0
    %313 = vmatpush1.bf16.msra.mxu0 0
    %314 = vmatprep.subr.bf16.mxu0 0
    %315 = vmatpush1.bf16.msra.mxu0 0
    %316 = vmatprep.subr.bf16.mxu0 0
    %317 = vmatpush1.bf16.msra.mxu0 0
    %318 = vmatprep.subr.bf16.mxu0 0
    %319 = vmatpush1.bf16.msra.mxu0 0
    %320 = vmatprep.subr.bf16.mxu0 0
    %321 = vmatpush1.bf16.msra.mxu0 0
    %322 = vmatprep.subr.bf16.mxu0 0
    %323 = vmatpush1.bf16.msra.mxu0 0
    %324 = vmatprep.subr.bf16.mxu0 0
    %325 = vmatpush1.bf16.msra.mxu0 0
    %326 = vmatprep.subr.bf16.mxu0 0
    %327 = vmatpush1.bf16.msra.mxu0 0
    %328 = vmatprep.subr.bf16.mxu0 0
    %329 = vmatpush1.bf16.msra.mxu0 0
    %330 = vmatprep.subr.bf16.mxu0 0
    %331 = vmatpush1.bf16.msra.mxu0 0
    %332 = vmatprep.subr.bf16.mxu0 0
    %333 = vmatpush1.bf16.msra.mxu0 0
    %334 = vmatprep.mubr.bf16.mxu0 0
    %335 = vmatmul.mubr.bf16.gmra.mrb[0].mxu0 %v300
    %v336 = vpop.f32.mrb[0].mxu0
    %v337 = vadd.f32 0.0, %v336
    %v338 = vpop.f32.mrb[0].mxu0
    %v339 = vpop.f32.mrb[0].mxu0
    %v340 = vadd.f32 0.0, %v339
    %v341 = vpop.f32.mrb[0].mxu0
    %342 = vdwg.mxu0
    %v343 = vpack.c.bf16 %v337, %v337
    %v344 = vpack.c.bf16 %v340, %v340
    %s345 = scalar_lea.vmem %s5, 1
    %v346 = vld [vmem:[%s345] sm:$0x1]
    %v348 = vlaneseq
    %v349 = vshrl.u32 %v348, 7
    %v350 = vsub.s32 0, %v349
    %v351 = vrot.slane %v346, %v350
    %v354 = vsel %vm127, %v281, 0
    %v357 = vsel %vm131, %v343, 0
    %359 = vmatprep.subr.bf16.mxu0 0
    %360 = vmatpush1.bf16.msra.mxu0 %v357
    %361 = vmatprep.subr.bf16.mxu0 0
    %362 = vmatpush1.bf16.msra.mxu0 0
    %363 = vmatprep.subr.bf16.mxu0 0
    %364 = vmatpush1.bf16.msra.mxu0 0
    %365 = vmatprep.subr.bf16.mxu0 0
    %366 = vmatpush1.bf16.msra.mxu0 0
    %367 = vmatprep.subr.bf16.mxu0 0
    %368 = vmatpush1.bf16.msra.mxu0 0
    %369 = vmatprep.subr.bf16.mxu0 0
    %370 = vmatpush1.bf16.msra.mxu0 0
    %371 = vmatprep.subr.bf16.mxu0 0
    %372 = vmatpush1.bf16.msra.mxu0 0
    %373 = vmatprep.subr.bf16.mxu0 0
    %374 = vmatpush1.bf16.msra.mxu0 0
    %375 = vmatprep.subr.bf16.mxu0 0
    %376 = vmatpush1.bf16.msra.mxu0 0
    %377 = vmatprep.subr.bf16.mxu0 0
    %378 = vmatpush1.bf16.msra.mxu0 0
    %379 = vmatprep.subr.bf16.mxu0 0
    %380 = vmatpush1.bf16.msra.mxu0 0
    %381 = vmatprep.subr.bf16.mxu0 0
    %382 = vmatpush1.bf16.msra.mxu0 0
    %383 = vmatprep.subr.bf16.mxu0 0
    %384 = vmatpush1.bf16.msra.mxu0 0
    %385 = vmatprep.subr.bf16.mxu0 0
    %386 = vmatpush1.bf16.msra.mxu0 0
    %387 = vmatprep.subr.bf16.mxu0 0
    %388 = vmatpush1.bf16.msra.mxu0 0
    %389 = vmatprep.subr.bf16.mxu0 0
    %390 = vmatpush1.bf16.msra.mxu0 0
    %391 = vmatprep.mubr.bf16.mxu0 0
    %392 = vmatmul.mubr.bf16.gmra.mrb[0].mxu0 %v354
    %v393 = vpop.f32.mrb[0].mxu0
    %v394 = vadd.f32 %v351, %v393
    %v395 = vpop.f32.mrb[0].mxu0
    %v396 = vpop.f32.mrb[0].mxu0
    %v397 = vpop.f32.mrb[0].mxu0
    %398 = vdwg.mxu0
    %v400 = vsel %vm127, %v282, 0
    %v403 = vsel %vm131, %v344, 0
    %405 = vmatprep.subr.bf16.mxu0 0
    %406 = vmatpush1.bf16.msra.mxu0 %v403
    %407 = vmatprep.subr.bf16.mxu0 0
    %408 = vmatpush1.bf16.msra.mxu0 0
    %409 = vmatprep.subr.bf16.mxu0 0
    %410 = vmatpush1.bf16.msra.mxu0 0
    %411 = vmatprep.subr.bf16.mxu0 0
    %412 = vmatpush1.bf16.msra.mxu0 0
    %413 = vmatprep.subr.bf16.mxu0 0
    %414 = vmatpush1.bf16.msra.mxu0 0
    %415 = vmatprep.subr.bf16.mxu0 0
    %416 = vmatpush1.bf16.msra.mxu0 0
    %417 = vmatprep.subr.bf16.mxu0 0
    %418 = vmatpush1.bf16.msra.mxu0 0
    %419 = vmatprep.subr.bf16.mxu0 0
    %420 = vmatpush1.bf16.msra.mxu0 0
    %421 = vmatprep.subr.bf16.mxu0 0
    %422 = vmatpush1.bf16.msra.mxu0 0
    %423 = vmatprep.subr.bf16.mxu0 0
    %424 = vmatpush1.bf16.msra.mxu0 0
    %425 = vmatprep.subr.bf16.mxu0 0
    %426 = vmatpush1.bf16.msra.mxu0 0
    %427 = vmatprep.subr.bf16.mxu0 0
    %428 = vmatpush1.bf16.msra.mxu0 0
    %429 = vmatprep.subr.bf16.mxu0 0
    %430 = vmatpush1.bf16.msra.mxu0 0
    %431 = vmatprep.subr.bf16.mxu0 0
    %432 = vmatpush1.bf16.msra.mxu0 0
    %433 = vmatprep.subr.bf16.mxu0 0
    %434 = vmatpush1.bf16.msra.mxu0 0
    %435 = vmatprep.subr.bf16.mxu0 0
    %436 = vmatpush1.bf16.msra.mxu0 0
    %437 = vmatprep.mubr.bf16.mxu0 0
    %438 = vmatmul.mubr.bf16.gmra.mrb[0].mxu0 %v400
    %v439 = vpop.f32.mrb[0].mxu0
    %v440 = vadd.f32 %v351, %v439
    %v441 = vpop.f32.mrb[0].mxu0
    %v442 = vpop.f32.mrb[0].mxu0
    %v443 = vpop.f32.mrb[0].mxu0
    %444 = vdwg.mxu0
    %v445 = vmax.f32 %v394, 0.0
    %v446 = vmax.f32 %v440, 0.0
    %v447 = vlaneseq
    %v448 = vshrl.u32 %v447, 7
    %v449 = vsub.s32 0, %v448
    %v450 = vrot.slane %v284, %v449
    %452 = vbcast.lane.b32.xlu0 %v450, 256
    %v453 = vpop.permute.xlu0 %452
    %v454 = vlaneseq
    %v455 = vshrl.u32 %v454, 7
    %v456 = vsub.s32 1, %v455
    %v457 = vrot.slane %v284, %v456
    %459 = vbcast.lane.b32.xlu0 %v457, 256
    %v460 = vpop.permute.xlu0 %459
    %v461 = vmul.f32 %v445, %v453
    %v462 = vmul.f32 %v446, %v460
    %v463 = vsel %vm239, %v461, 0.0
    %v464 = vrot.slane %v463, 4
    %v465 = vadd.f32 %v463, %v464
    %v466 = vrot.slane %v465, 2
    %v467 = vadd.f32 %v465, %v466
    %v468 = vrot.slane %v467, 1
    %v469 = vadd.f32 %v467, %v468
    %v470 = vsel %vm239, %v462, 0.0
    %v471 = vrot.slane %v470, 4
    %v472 = vadd.f32 %v470, %v471
    %v473 = vrot.slane %v472, 2
    %v474 = vadd.f32 %v472, %v473
    %v475 = vrot.slane %v474, 1
    %v476 = vadd.f32 %v474, %v475
    %v477 = vsel %vm254, %v284, 0.0
    %478 = vadd.xlane.f32.xlu0 %v477
    %v479 = vpop.xlane.xlu0 %478
    %v480 = vmax.f32 %v479, 1.0
    %v482 = vrot.slane %v480, 1
    %v485 = vrcp.pop %v480
    %v486 = vmul.f32 %v469, %v485
    %v487 = vrcp.pop %v482
    %v488 = vmul.f32 %v476, %v487
    %v489 = vld [vmem:[%s3] sm:$0x3]
    %491 = vset.pattern.permute.xlu0 1
    %492 = vperm.xlu0 %491, %v489
    %v493 = vpop.permute.xlu0 %492
    %v494 = vrot.slane %v493, 1
    %v497 = vmul.f32 %v486, %v493
    %v498 = vmul.f32 %v488, %v494
    %s499 = scalar_lea.vmem %s0, 16
    %v500 = vld [vmem:[%s499] sm:$0xf]
    %v501 = vld [vmem:[%s499 + $0x4] sm:$0xf]
    %s502 = scalar_lea.vmem %s1, 16
    %v503 = vld [vmem:[%s502] sm:$0xf]
    %v504 = vld [vmem:[%s502 + $0x4] sm:$0xf]
    %s505 = scalar_lea.vmem %s2, 4
    %v506 = vld [vmem:[%s505] sm:$0x3]
    %s507 = scalar_lea.vmem %s4, 16
    %v508 = vld [vmem:[%s507] sm:$0xf]
    %v509 = vld [vmem:[%s507 + $0x4] sm:$0xf]
    %v512 = vunpack.c.l.b16 %v500
    %v513 = vunpack.c.l.b16 %v501
    %v514 = vpack.c.b16 %v513, %v512
    %v517 = vunpack.c.l.b16 %v508
    %v518 = vunpack.c.l.b16 %v509
    %v519 = vpack.c.b16 %v518, %v517
    %v522 = vsel %vm73, %v514, 0
    %524 = vmatprep.subr.bf16.mxu0 0
    %525 = vmatpush1.bf16.msra.mxu0 %v519
    %526 = vmatprep.subr.bf16.mxu0 0
    %527 = vmatpush1.bf16.msra.mxu0 0
    %528 = vmatprep.subr.bf16.mxu0 0
    %529 = vmatpush1.bf16.msra.mxu0 0
    %530 = vmatprep.subr.bf16.mxu0 0
    %531 = vmatpush1.bf16.msra.mxu0 0
    %532 = vmatprep.subr.bf16.mxu0 0
    %533 = vmatpush1.bf16.msra.mxu0 0
    %534 = vmatprep.subr.bf16.mxu0 0
    %535 = vmatpush1.bf16.msra.mxu0 0
    %536 = vmatprep.subr.bf16.mxu0 0
    %537 = vmatpush1.bf16.msra.mxu0 0
    %538 = vmatprep.subr.bf16.mxu0 0
    %539 = vmatpush1.bf16.msra.mxu0 0
    %540 = vmatprep.subr.bf16.mxu0 0
    %541 = vmatpush1.bf16.msra.mxu0 0
    %542 = vmatprep.subr.bf16.mxu0 0
    %543 = vmatpush1.bf16.msra.mxu0 0
    %544 = vmatprep.subr.bf16.mxu0 0
    %545 = vmatpush1.bf16.msra.mxu0 0
    %546 = vmatprep.subr.bf16.mxu0 0
    %547 = vmatpush1.bf16.msra.mxu0 0
    %548 = vmatprep.subr.bf16.mxu0 0
    %549 = vmatpush1.bf16.msra.mxu0 0
    %550 = vmatprep.subr.bf16.mxu0 0
    %551 = vmatpush1.bf16.msra.mxu0 0
    %552 = vmatprep.subr.bf16.mxu0 0
    %553 = vmatpush1.bf16.msra.mxu0 0
    %554 = vmatprep.subr.bf16.mxu0 0
    %555 = vmatpush1.bf16.msra.mxu0 0
    %556 = vmatprep.mubr.bf16.mxu0 0
    %557 = vmatmul.mubr.bf16.gmra.mrb[0].mxu0 %v522
    %v558 = vpop.f32.mrb[0].mxu0
    %v559 = vadd.f32 0.0, %v558
    %v560 = vpop.f32.mrb[0].mxu0
    %v561 = vpop.f32.mrb[0].mxu0
    %v562 = vadd.f32 0.0, %v561
    %v563 = vpop.f32.mrb[0].mxu0
    %564 = vdwg.mxu0
    %v565 = vpack.c.bf16 %v559, %v559
    %v566 = vpack.c.bf16 %v562, %v562
    %s567 = scalar_lea.vmem %s5, 2
    %v568 = vld [vmem:[%s567] sm:$0x1]
    %v570 = vlaneseq
    %v571 = vshrl.u32 %v570, 7
    %v572 = vsub.s32 0, %v571
    %v573 = vrot.slane %v568, %v572
    %v576 = vsel %vm127, %v503, 0
    %v579 = vsel %vm131, %v565, 0
    %581 = vmatprep.subr.bf16.mxu0 0
    %582 = vmatpush1.bf16.msra.mxu0 %v579
    %583 = vmatprep.subr.bf16.mxu0 0
    %584 = vmatpush1.bf16.msra.mxu0 0
    %585 = vmatprep.subr.bf16.mxu0 0
    %586 = vmatpush1.bf16.msra.mxu0 0
    %587 = vmatprep.subr.bf16.mxu0 0
    %588 = vmatpush1.bf16.msra.mxu0 0
    %589 = vmatprep.subr.bf16.mxu0 0
    %590 = vmatpush1.bf16.msra.mxu0 0
    %591 = vmatprep.subr.bf16.mxu0 0
    %592 = vmatpush1.bf16.msra.mxu0 0
    %593 = vmatprep.subr.bf16.mxu0 0
    %594 = vmatpush1.bf16.msra.mxu0 0
    %595 = vmatprep.subr.bf16.mxu0 0
    %596 = vmatpush1.bf16.msra.mxu0 0
    %597 = vmatprep.subr.bf16.mxu0 0
    %598 = vmatpush1.bf16.msra.mxu0 0
    %599 = vmatprep.subr.bf16.mxu0 0
    %600 = vmatpush1.bf16.msra.mxu0 0
    %601 = vmatprep.subr.bf16.mxu0 0
    %602 = vmatpush1.bf16.msra.mxu0 0
    %603 = vmatprep.subr.bf16.mxu0 0
    %604 = vmatpush1.bf16.msra.mxu0 0
    %605 = vmatprep.subr.bf16.mxu0 0
    %606 = vmatpush1.bf16.msra.mxu0 0
    %607 = vmatprep.subr.bf16.mxu0 0
    %608 = vmatpush1.bf16.msra.mxu0 0
    %609 = vmatprep.subr.bf16.mxu0 0
    %610 = vmatpush1.bf16.msra.mxu0 0
    %611 = vmatprep.subr.bf16.mxu0 0
    %612 = vmatpush1.bf16.msra.mxu0 0
    %613 = vmatprep.mubr.bf16.mxu0 0
    %614 = vmatmul.mubr.bf16.gmra.mrb[0].mxu0 %v576
    %v615 = vpop.f32.mrb[0].mxu0
    %v616 = vadd.f32 %v573, %v615
    %v617 = vpop.f32.mrb[0].mxu0
    %v618 = vpop.f32.mrb[0].mxu0
    %v619 = vpop.f32.mrb[0].mxu0
    %620 = vdwg.mxu0
    %v622 = vsel %vm127, %v504, 0
    %v625 = vsel %vm131, %v566, 0
    %627 = vmatprep.subr.bf16.mxu0 0
    %628 = vmatpush1.bf16.msra.mxu0 %v625
    %629 = vmatprep.subr.bf16.mxu0 0
    %630 = vmatpush1.bf16.msra.mxu0 0
    %631 = vmatprep.subr.bf16.mxu0 0
    %632 = vmatpush1.bf16.msra.mxu0 0
    %633 = vmatprep.subr.bf16.mxu0 0
    %634 = vmatpush1.bf16.msra.mxu0 0
    %635 = vmatprep.subr.bf16.mxu0 0
    %636 = vmatpush1.bf16.msra.mxu0 0
    %637 = vmatprep.subr.bf16.mxu0 0
    %638 = vmatpush1.bf16.msra.mxu0 0
    %639 = vmatprep.subr.bf16.mxu0 0
    %640 = vmatpush1.bf16.msra.mxu0 0
    %641 = vmatprep.subr.bf16.mxu0 0
    %642 = vmatpush1.bf16.msra.mxu0 0
    %643 = vmatprep.subr.bf16.mxu0 0
    %644 = vmatpush1.bf16.msra.mxu0 0
    %645 = vmatprep.subr.bf16.mxu0 0
    %646 = vmatpush1.bf16.msra.mxu0 0
    %647 = vmatprep.subr.bf16.mxu0 0
    %648 = vmatpush1.bf16.msra.mxu0 0
    %649 = vmatprep.subr.bf16.mxu0 0
    %650 = vmatpush1.bf16.msra.mxu0 0
    %651 = vmatprep.subr.bf16.mxu0 0
    %652 = vmatpush1.bf16.msra.mxu0 0
    %653 = vmatprep.subr.bf16.mxu0 0
    %654 = vmatpush1.bf16.msra.mxu0 0
    %655 = vmatprep.subr.bf16.mxu0 0
    %656 = vmatpush1.bf16.msra.mxu0 0
    %657 = vmatprep.subr.bf16.mxu0 0
    %658 = vmatpush1.bf16.msra.mxu0 0
    %659 = vmatprep.mubr.bf16.mxu0 0
    %660 = vmatmul.mubr.bf16.gmra.mrb[0].mxu0 %v622
    %v661 = vpop.f32.mrb[0].mxu0
    %v662 = vadd.f32 %v573, %v661
    %v663 = vpop.f32.mrb[0].mxu0
    %v664 = vpop.f32.mrb[0].mxu0
    %v665 = vpop.f32.mrb[0].mxu0
    %666 = vdwg.mxu0
    %v667 = vmax.f32 %v616, 0.0
    %v668 = vmax.f32 %v662, 0.0
    %v669 = vlaneseq
    %v670 = vshrl.u32 %v669, 7
    %v671 = vsub.s32 0, %v670
    %v672 = vrot.slane %v506, %v671
    %674 = vbcast.lane.b32.xlu0 %v672, 256
    %v675 = vpop.permute.xlu0 %674
    %v676 = vlaneseq
    %v677 = vshrl.u32 %v676, 7
    %v678 = vsub.s32 1, %v677
    %v679 = vrot.slane %v506, %v678
    %681 = vbcast.lane.b32.xlu0 %v679, 256
    %v682 = vpop.permute.xlu0 %681
    %v683 = vmul.f32 %v667, %v675
    %v684 = vmul.f32 %v668, %v682
    %v685 = vsel %vm239, %v683, 0.0
    %v686 = vrot.slane %v685, 4
    %v687 = vadd.f32 %v685, %v686
    %v688 = vrot.slane %v687, 2
    %v689 = vadd.f32 %v687, %v688
    %v690 = vrot.slane %v689, 1
    %v691 = vadd.f32 %v689, %v690
    %v692 = vsel %vm239, %v684, 0.0
    %v693 = vrot.slane %v692, 4
    %v694 = vadd.f32 %v692, %v693
    %v695 = vrot.slane %v694, 2
    %v696 = vadd.f32 %v694, %v695
    %v697 = vrot.slane %v696, 1
    %v698 = vadd.f32 %v696, %v697
    %v699 = vsel %vm254, %v506, 0.0
    %700 = vadd.xlane.f32.xlu0 %v699
    %v701 = vpop.xlane.xlu0 %700
    %v702 = vmax.f32 %v701, 1.0
    %v704 = vrot.slane %v702, 1
    %v707 = vrcp.pop %v702
    %v708 = vmul.f32 %v691, %v707
    %v709 = vrcp.pop %v704
    %v710 = vmul.f32 %v698, %v709
    %v711 = vld [vmem:[%s3] sm:$0x3]
    %713 = vset.pattern.permute.xlu0 2
    %714 = vperm.xlu0 %713, %v711
    %v715 = vpop.permute.xlu0 %714
    %v716 = vrot.slane %v715, 1
    %v719 = vmul.f32 %v708, %v715
    %v720 = vmul.f32 %v710, %v716
    %v723 = vrot.slane %v276, 7
    %vm724 = vcmask 1041409
    %v725 = vsel %vm724, %v723, %v275
    %v729 = vrot.slane %v498, 7
    %v730 = vsel %vm724, %v729, %v497
    %731 = vrot.lane.b32.xlu0 %v730, 32
    %v732 = vpop.permute.xlu0 %731
    %v736 = vrot.slane %v720, 7
    %v737 = vsel %vm724, %v736, %v719
    %738 = vrot.lane.b32.xlu0 %v737, 64
    %v739 = vpop.permute.xlu0 %738
    %v741 = vsel %vm239, %v725, %v732
    %vm742 = vcmask 523264
    %v743 = vsel %vm742, %v741, %v739
    %v744 = vld [vmem:[%s6] sm:$0xff]
    %v745 = vld [vmem:[%s6 + $0x8] sm:$0xff]
    %v746 = vld [vmem:[%s6 + $0x10] sm:$0xff]
    %v747 = vld [vmem:[%s6 + $0x18] sm:$0xff]
    %v748 = vld [vmem:[%s6 + $0x20] sm:$0xff]
    %v749 = vld [vmem:[%s6 + $0x28] sm:$0xff]
    %v750 = vld [vmem:[%s6 + $0x30] sm:$0xff]
    %v751 = vld [vmem:[%s6 + $0x38] sm:$0xff]
    %v752 = vld [vmem:[%s6 + $0x40] sm:$0xff]
    %v753 = vld [vmem:[%s6 + $0x48] sm:$0xff]
    %v754 = vld [vmem:[%s6 + $0x50] sm:$0xff]
    %v755 = vld [vmem:[%s6 + $0x58] sm:$0xff]
    %v756 = vld [vmem:[%s7] sm:$0x1]
    %v758 = vlaneseq
    %v759 = vshrl.u32 %v758, 7
    %v760 = vsub.s32 0, %v759
    %v761 = vrot.slane %v756, %v760
    %vm763 = vcmask 785408
    %v765 = vsel %vm763, %v743, 0
    %767 = vmatprep.subr.mxu0 0.0
    %768 = vmatpush1.msra.mxu0 %v744
    %769 = vmatprep.subr.mxu0 0.0
    %770 = vmatpush1.msra.mxu0 %v745
    %771 = vmatprep.subr.mxu0 0.0
    %772 = vmatpush1.msra.mxu0 %v746
    %773 = vmatprep.subr.mxu0 0.0
    %774 = vmatpush1.msra.mxu0 %v747
    %775 = vmatprep.subr.mxu0 0.0
    %776 = vmatpush1.msra.mxu0 %v748
    %777 = vmatprep.subr.mxu0 0.0
    %778 = vmatpush1.msra.mxu0 %v749
    %779 = vmatprep.subr.mxu0 0.0
    %780 = vmatpush1.msra.mxu0 %v750
    %781 = vmatprep.subr.mxu0 0.0
    %782 = vmatpush1.msra.mxu0 %v751
    %783 = vmatprep.subr.mxu0 0.0
    %784 = vmatpush1.msra.mxu0 %v752
    %785 = vmatprep.subr.mxu0 0.0
    %786 = vmatpush1.msra.mxu0 %v753
    %787 = vmatprep.subr.mxu0 0.0
    %788 = vmatpush1.msra.mxu0 %v754
    %789 = vmatprep.subr.mxu0 0.0
    %790 = vmatpush1.msra.mxu0 %v755
    %791 = vmatprep.subr.mxu0 0.0
    %792 = vmatpush1.msra.mxu0 0.0
    %793 = vmatprep.subr.mxu0 0.0
    %794 = vmatpush1.msra.mxu0 0.0
    %795 = vmatprep.subr.mxu0 0.0
    %796 = vmatpush1.msra.mxu0 0.0
    %797 = vmatprep.subr.mxu0 0.0
    %798 = vmatpush1.msra.mxu0 0.0
    %799 = vmatprep.subr.mxu0 0.0
    %800 = vmatpush1.msra.mxu0 0.0
    %801 = vmatprep.subr.mxu0 0.0
    %802 = vmatpush1.msra.mxu0 0.0
    %803 = vmatprep.subr.mxu0 0.0
    %804 = vmatpush1.msra.mxu0 0.0
    %805 = vmatprep.subr.mxu0 0.0
    %806 = vmatpush1.msra.mxu0 0.0
    %807 = vmatprep.subr.mxu0 0.0
    %808 = vmatpush1.msra.mxu0 0.0
    %809 = vmatprep.subr.mxu0 0.0
    %810 = vmatpush1.msra.mxu0 0.0
    %811 = vmatprep.subr.mxu0 0.0
    %812 = vmatpush1.msra.mxu0 0.0
    %813 = vmatprep.subr.mxu0 0.0
    %814 = vmatpush1.msra.mxu0 0.0
    %815 = vmatprep.subr.mxu0 0.0
    %816 = vmatpush1.msra.mxu0 0.0
    %817 = vmatprep.subr.mxu0 0.0
    %818 = vmatpush1.msra.mxu0 0.0
    %819 = vmatprep.subr.mxu0 0.0
    %820 = vmatpush1.msra.mxu0 0.0
    %821 = vmatprep.subr.mxu0 0.0
    %822 = vmatpush1.msra.mxu0 0.0
    %823 = vmatprep.subr.mxu0 0.0
    %824 = vmatpush1.msra.mxu0 0.0
    %825 = vmatprep.subr.mxu0 0.0
    %826 = vmatpush1.msra.mxu0 0.0
    %827 = vmatprep.subr.mxu0 0.0
    %828 = vmatpush1.msra.mxu0 0.0
    %829 = vmatprep.subr.mxu0 0.0
    %830 = vmatpush1.msra.mxu0 0.0
    %831 = vmatprep.mubr.f32.mxu0 0.0
    %832 = vmatmul.mubr.f32.gmra.mrb[0].mxu0 %v765
    %v833 = vpop.f32.mrb[0].mxu0
    %v834 = vadd.f32 %v761, %v833
    %v835 = vpop.f32.mrb[0].mxu0
    %836 = vdwg.mxu0
    %v837 = vmul.f32 %v834, %v834
    %v838 = vmul.f32 %v834, %v837
    %v839 = vmul.f32 %v838, 0.044715
    %v840 = vadd.f32 %v834, %v839
    %v841 = vmul.f32 %v840, 0.7978846
    %v842 = vtanh.pop %v841
    %v843 = vadd.f32 %v842, 1.0
    %v844 = vmul.f32 %v843, 0.5
    %v845 = vmul.f32 %v834, %v844
    %v846 = vld [vmem:[%s8] sm:$0xff]
    %v847 = vld [vmem:[%s8 + $0x8] sm:$0xff]
    %v848 = vld [vmem:[%s8 + $0x10] sm:$0xff]
    %v849 = vld [vmem:[%s8 + $0x18] sm:$0xff]
    %v850 = vld [vmem:[%s8 + $0x20] sm:$0xff]
    %v851 = vld [vmem:[%s8 + $0x28] sm:$0xff]
    %v852 = vld [vmem:[%s8 + $0x30] sm:$0xff]
    %v853 = vld [vmem:[%s8 + $0x38] sm:$0xff]
    %v854 = vld [vmem:[%s9] sm:$0x1]
    %v856 = vlaneseq
    %v857 = vshrl.u32 %v856, 7
    %v858 = vsub.s32 0, %v857
    %v859 = vrot.slane %v854, %v858
    %v862 = vsel %vm742, %v845, 0
    %864 = vmatprep.subr.mxu0 0.0
    %865 = vmatpush1.msra.mxu0 %v846
    %866 = vmatprep.subr.mxu0 0.0
    %867 = vmatpush1.msra.mxu0 %v847
    %868 = vmatprep.subr.mxu0 0.0
    %869 = vmatpush1.msra.mxu0 %v848
    %870 = vmatprep.subr.mxu0 0.0
    %871 = vmatpush1.msra.mxu0 %v849
    %872 = vmatprep.subr.mxu0 0.0
    %873 = vmatpush1.msra.mxu0 %v850
    %874 = vmatprep.subr.mxu0 0.0
    %875 = vmatpush1.msra.mxu0 %v851
    %876 = vmatprep.subr.mxu0 0.0
    %877 = vmatpush1.msra.mxu0 %v852
    %878 = vmatprep.subr.mxu0 0.0
    %879 = vmatpush1.msra.mxu0 %v853
    %880 = vmatprep.subr.mxu0 0.0
    %881 = vmatpush1.msra.mxu0 0.0
    %882 = vmatprep.subr.mxu0 0.0
    %883 = vmatpush1.msra.mxu0 0.0
    %884 = vmatprep.subr.mxu0 0.0
    %885 = vmatpush1.msra.mxu0 0.0
    %886 = vmatprep.subr.mxu0 0.0
    %887 = vmatpush1.msra.mxu0 0.0
    %888 = vmatprep.subr.mxu0 0.0
    %889 = vmatpush1.msra.mxu0 0.0
    %890 = vmatprep.subr.mxu0 0.0
    %891 = vmatpush1.msra.mxu0 0.0
    %892 = vmatprep.subr.mxu0 0.0
    %893 = vmatpush1.msra.mxu0 0.0
    %894 = vmatprep.subr.mxu0 0.0
    %895 = vmatpush1.msra.mxu0 0.0
    %896 = vmatprep.subr.mxu0 0.0
    %897 = vmatpush1.msra.mxu0 0.0
    %898 = vmatprep.subr.mxu0 0.0
    %899 = vmatpush1.msra.mxu0 0.0
    %900 = vmatprep.subr.mxu0 0.0
    %901 = vmatpush1.msra.mxu0 0.0
    %902 = vmatprep.subr.mxu0 0.0
    %903 = vmatpush1.msra.mxu0 0.0
    %904 = vmatprep.subr.mxu0 0.0
    %905 = vmatpush1.msra.mxu0 0.0
    %906 = vmatprep.subr.mxu0 0.0
    %907 = vmatpush1.msra.mxu0 0.0
    %908 = vmatprep.subr.mxu0 0.0
    %909 = vmatpush1.msra.mxu0 0.0
    %910 = vmatprep.subr.mxu0 0.0
    %911 = vmatpush1.msra.mxu0 0.0
    %912 = vmatprep.subr.mxu0 0.0
    %913 = vmatpush1.msra.mxu0 0.0
    %914 = vmatprep.subr.mxu0 0.0
    %915 = vmatpush1.msra.mxu0 0.0
    %916 = vmatprep.subr.mxu0 0.0
    %917 = vmatpush1.msra.mxu0 0.0
    %918 = vmatprep.subr.mxu0 0.0
    %919 = vmatpush1.msra.mxu0 0.0
    %920 = vmatprep.subr.mxu0 0.0
    %921 = vmatpush1.msra.mxu0 0.0
    %922 = vmatprep.subr.mxu0 0.0
    %923 = vmatpush1.msra.mxu0 0.0
    %924 = vmatprep.subr.mxu0 0.0
    %925 = vmatpush1.msra.mxu0 0.0
    %926 = vmatprep.subr.mxu0 0.0
    %927 = vmatpush1.msra.mxu0 0.0
    %928 = vmatprep.mubr.f32.mxu0 0.0
    %929 = vmatmul.mubr.f32.gmra.mrb[0].mxu0 %v862
    %v930 = vpop.f32.mrb[0].mxu0
    %v931 = vadd.f32 %v859, %v930
    %v932 = vpop.f32.mrb[0].mxu0
    %933 = vdwg.mxu0
    %v934 = vmul.f32 %v931, %v931
    %v935 = vmul.f32 %v931, %v934
    %v936 = vmul.f32 %v935, 0.044715
    %v937 = vadd.f32 %v931, %v936
    %v938 = vmul.f32 %v937, 0.7978846
    %v939 = vtanh.pop %v938
    %v940 = vadd.f32 %v939, 1.0
    %v941 = vmul.f32 %v940, 0.5
    %v942 = vmul.f32 %v931, %v941
    %v943 = vld [vmem:[%s10] sm:$0xff]
    %v944 = vld [vmem:[%s10 + $0x8] sm:$0xff]
    %v945 = vld [vmem:[%s10 + $0x10] sm:$0xff]
    %v946 = vld [vmem:[%s10 + $0x18] sm:$0xff]
    %v947 = vld [vmem:[%s10 + $0x20] sm:$0xff]
    %v948 = vld [vmem:[%s10 + $0x28] sm:$0xff]
    %v949 = vld [vmem:[%s10 + $0x30] sm:$0xff]
    %v950 = vld [vmem:[%s10 + $0x38] sm:$0xff]
    %v951 = vld [vmem:[%s11] sm:$0x1]
    %v953 = vlaneseq
    %v954 = vshrl.u32 %v953, 7
    %v955 = vsub.s32 0, %v954
    %v956 = vrot.slane %v951, %v955
    %v959 = vsel %vm742, %v942, 0
    %961 = vmatprep.subr.mxu0 0.0
    %962 = vmatpush1.msra.mxu0 %v943
    %963 = vmatprep.subr.mxu0 0.0
    %964 = vmatpush1.msra.mxu0 %v944
    %965 = vmatprep.subr.mxu0 0.0
    %966 = vmatpush1.msra.mxu0 %v945
    %967 = vmatprep.subr.mxu0 0.0
    %968 = vmatpush1.msra.mxu0 %v946
    %969 = vmatprep.subr.mxu0 0.0
    %970 = vmatpush1.msra.mxu0 %v947
    %971 = vmatprep.subr.mxu0 0.0
    %972 = vmatpush1.msra.mxu0 %v948
    %973 = vmatprep.subr.mxu0 0.0
    %974 = vmatpush1.msra.mxu0 %v949
    %975 = vmatprep.subr.mxu0 0.0
    %976 = vmatpush1.msra.mxu0 %v950
    %977 = vmatprep.subr.mxu0 0.0
    %978 = vmatpush1.msra.mxu0 0.0
    %979 = vmatprep.subr.mxu0 0.0
    %980 = vmatpush1.msra.mxu0 0.0
    %981 = vmatprep.subr.mxu0 0.0
    %982 = vmatpush1.msra.mxu0 0.0
    %983 = vmatprep.subr.mxu0 0.0
    %984 = vmatpush1.msra.mxu0 0.0
    %985 = vmatprep.subr.mxu0 0.0
    %986 = vmatpush1.msra.mxu0 0.0
    %987 = vmatprep.subr.mxu0 0.0
    %988 = vmatpush1.msra.mxu0 0.0
    %989 = vmatprep.subr.mxu0 0.0
    %990 = vmatpush1.msra.mxu0 0.0
    %991 = vmatprep.subr.mxu0 0.0
    %992 = vmatpush1.msra.mxu0 0.0
    %993 = vmatprep.subr.mxu0 0.0
    %994 = vmatpush1.msra.mxu0 0.0
    %995 = vmatprep.subr.mxu0 0.0
    %996 = vmatpush1.msra.mxu0 0.0
    %997 = vmatprep.subr.mxu0 0.0
    %998 = vmatpush1.msra.mxu0 0.0
    %999 = vmatprep.subr.mxu0 0.0
    %1000 = vmatpush1.msra.mxu0 0.0
    %1001 = vmatprep.subr.mxu0 0.0
    %1002 = vmatpush1.msra.mxu0 0.0
    %1003 = vmatprep.subr.mxu0 0.0
    %1004 = vmatpush1.msra.mxu0 0.0
    %1005 = vmatprep.subr.mxu0 0.0
    %1006 = vmatpush1.msra.mxu0 0.0
    %1007 = vmatprep.subr.mxu0 0.0
    %1008 = vmatpush1.msra.mxu0 0.0
    %1009 = vmatprep.subr.mxu0 0.0
    %1010 = vmatpush1.msra.mxu0 0.0
    %1011 = vmatprep.subr.mxu0 0.0
    %1012 = vmatpush1.msra.mxu0 0.0
    %1013 = vmatprep.subr.mxu0 0.0
    %1014 = vmatpush1.msra.mxu0 0.0
    %1015 = vmatprep.subr.mxu0 0.0
    %1016 = vmatpush1.msra.mxu0 0.0
    %1017 = vmatprep.subr.mxu0 0.0
    %1018 = vmatpush1.msra.mxu0 0.0
    %1019 = vmatprep.subr.mxu0 0.0
    %1020 = vmatpush1.msra.mxu0 0.0
    %1021 = vmatprep.subr.mxu0 0.0
    %1022 = vmatpush1.msra.mxu0 0.0
    %1023 = vmatprep.subr.mxu0 0.0
    %1024 = vmatpush1.msra.mxu0 0.0
    %1025 = vmatprep.mubr.f32.mxu0 0.0
    %1026 = vmatmul.mubr.f32.gmra.mrb[0].mxu0 %v959
    %v1027 = vpop.f32.mrb[0].mxu0
    %v1028 = vadd.f32 %v956, %v1027
    %v1029 = vpop.f32.mrb[0].mxu0
    %1030 = vdwg.mxu0
    %v1031 = vld [vmem:[%s12] sm:$0xff]
    %v1032 = vld [vmem:[%s12 + $0x8] sm:$0xff]
    %v1033 = vld [vmem:[%s12 + $0x10] sm:$0xff]
    %v1034 = vld [vmem:[%s12 + $0x18] sm:$0xff]
    %v1035 = vld [vmem:[%s13] sm:$0x1]
    %v1037 = vlaneseq
    %v1038 = vshrl.u32 %v1037, 7
    %v1039 = vsub.s32 0, %v1038
    %v1040 = vrot.slane %v1035, %v1039
    %v1043 = vsel %vm239, %v1028, 0
    %1045 = vmatprep.subr.mxu0 0.0
    %1046 = vmatpush1.msra.mxu0 %v1031
    %1047 = vmatprep.subr.mxu0 0.0
    %1048 = vmatpush1.msra.mxu0 %v1032
    %1049 = vmatprep.subr.mxu0 0.0
    %1050 = vmatpush1.msra.mxu0 %v1033
    %1051 = vmatprep.subr.mxu0 0.0
    %1052 = vmatpush1.msra.mxu0 %v1034
    %1053 = vmatprep.subr.mxu0 0.0
    %1054 = vmatpush1.msra.mxu0 0.0
    %1055 = vmatprep.subr.mxu0 0.0
    %1056 = vmatpush1.msra.mxu0 0.0
    %1057 = vmatprep.subr.mxu0 0.0
    %1058 = vmatpush1.msra.mxu0 0.0
    %1059 = vmatprep.subr.mxu0 0.0
    %1060 = vmatpush1.msra.mxu0 0.0
    %1061 = vmatprep.subr.mxu0 0.0
    %1062 = vmatpush1.msra.mxu0 0.0
    %1063 = vmatprep.subr.mxu0 0.0
    %1064 = vmatpush1.msra.mxu0 0.0
    %1065 = vmatprep.subr.mxu0 0.0
    %1066 = vmatpush1.msra.mxu0 0.0
    %1067 = vmatprep.subr.mxu0 0.0
    %1068 = vmatpush1.msra.mxu0 0.0
    %1069 = vmatprep.subr.mxu0 0.0
    %1070 = vmatpush1.msra.mxu0 0.0
    %1071 = vmatprep.subr.mxu0 0.0
    %1072 = vmatpush1.msra.mxu0 0.0
    %1073 = vmatprep.subr.mxu0 0.0
    %1074 = vmatpush1.msra.mxu0 0.0
    %1075 = vmatprep.subr.mxu0 0.0
    %1076 = vmatpush1.msra.mxu0 0.0
    %1077 = vmatprep.subr.mxu0 0.0
    %1078 = vmatpush1.msra.mxu0 0.0
    %1079 = vmatprep.subr.mxu0 0.0
    %1080 = vmatpush1.msra.mxu0 0.0
    %1081 = vmatprep.subr.mxu0 0.0
    %1082 = vmatpush1.msra.mxu0 0.0
    %1083 = vmatprep.subr.mxu0 0.0
    %1084 = vmatpush1.msra.mxu0 0.0
    %1085 = vmatprep.subr.mxu0 0.0
    %1086 = vmatpush1.msra.mxu0 0.0
    %1087 = vmatprep.subr.mxu0 0.0
    %1088 = vmatpush1.msra.mxu0 0.0
    %1089 = vmatprep.subr.mxu0 0.0
    %1090 = vmatpush1.msra.mxu0 0.0
    %1091 = vmatprep.subr.mxu0 0.0
    %1092 = vmatpush1.msra.mxu0 0.0
    %1093 = vmatprep.subr.mxu0 0.0
    %1094 = vmatpush1.msra.mxu0 0.0
    %1095 = vmatprep.subr.mxu0 0.0
    %1096 = vmatpush1.msra.mxu0 0.0
    %1097 = vmatprep.subr.mxu0 0.0
    %1098 = vmatpush1.msra.mxu0 0.0
    %1099 = vmatprep.subr.mxu0 0.0
    %1100 = vmatpush1.msra.mxu0 0.0
    %1101 = vmatprep.subr.mxu0 0.0
    %1102 = vmatpush1.msra.mxu0 0.0
    %1103 = vmatprep.subr.mxu0 0.0
    %1104 = vmatpush1.msra.mxu0 0.0
    %1105 = vmatprep.subr.mxu0 0.0
    %1106 = vmatpush1.msra.mxu0 0.0
    %1107 = vmatprep.subr.mxu0 0.0
    %1108 = vmatpush1.msra.mxu0 0.0
    %1109 = vmatprep.mubr.f32.mxu0 0.0
    %1110 = vmatmul.mubr.f32.gmra.mrb[0].mxu0 %v1043
    %v1111 = vpop.f32.mrb[0].mxu0
    %v1112 = vadd.f32 %v1040, %v1111
    %v1113 = vpop.f32.mrb[0].mxu0
    %1114 = vdwg.mxu0
    %v1115 = vmul.f32 %v1112, %v1112
    %v1116 = vmul.f32 %v1112, %v1115
    %v1117 = vmul.f32 %v1116, 0.044715
    %v1118 = vadd.f32 %v1112, %v1117
    %v1119 = vmul.f32 %v1118, 0.7978846
    %v1120 = vtanh.pop %v1119
    %v1121 = vadd.f32 %v1120, 1.0
    %v1122 = vmul.f32 %v1121, 0.5
    %v1123 = vmul.f32 %v1112, %v1122
    %v1124 = vld [vmem:[%s14] sm:$0xff]
    %v1125 = vld [vmem:[%s14 + $0x8] sm:$0xff]
    %v1126 = vld [vmem:[%s14 + $0x10] sm:$0xff]
    %v1127 = vld [vmem:[%s14 + $0x18] sm:$0xff]
    %v1128 = vld [vmem:[%s14 + $0x20] sm:$0xff]
    %v1129 = vld [vmem:[%s14 + $0x28] sm:$0xff]
    %v1130 = vld [vmem:[%s14 + $0x30] sm:$0xff]
    %v1131 = vld [vmem:[%s14 + $0x38] sm:$0xff]
    %v1132 = vld [vmem:[%s15] sm:$0x1]
    %v1134 = vlaneseq
    %v1135 = vshrl.u32 %v1134, 7
    %v1136 = vsub.s32 0, %v1135
    %v1137 = vrot.slane %v1132, %v1136
    %v1140 = vsel %vm742, %v1123, 0
    %1142 = vmatprep.subr.mxu0 0.0
    %1143 = vmatpush1.msra.mxu0 %v1124
    %1144 = vmatprep.subr.mxu0 0.0
    %1145 = vmatpush1.msra.mxu0 %v1125
    %1146 = vmatprep.subr.mxu0 0.0
    %1147 = vmatpush1.msra.mxu0 %v1126
    %1148 = vmatprep.subr.mxu0 0.0
    %1149 = vmatpush1.msra.mxu0 %v1127
    %1150 = vmatprep.subr.mxu0 0.0
    %1151 = vmatpush1.msra.mxu0 %v1128
    %1152 = vmatprep.subr.mxu0 0.0
    %1153 = vmatpush1.msra.mxu0 %v1129
    %1154 = vmatprep.subr.mxu0 0.0
    %1155 = vmatpush1.msra.mxu0 %v1130
    %1156 = vmatprep.subr.mxu0 0.0
    %1157 = vmatpush1.msra.mxu0 %v1131
    %1158 = vmatprep.subr.mxu0 0.0
    %1159 = vmatpush1.msra.mxu0 0.0
    %1160 = vmatprep.subr.mxu0 0.0
    %1161 = vmatpush1.msra.mxu0 0.0
    %1162 = vmatprep.subr.mxu0 0.0
    %1163 = vmatpush1.msra.mxu0 0.0
    %1164 = vmatprep.subr.mxu0 0.0
    %1165 = vmatpush1.msra.mxu0 0.0
    %1166 = vmatprep.subr.mxu0 0.0
    %1167 = vmatpush1.msra.mxu0 0.0
    %1168 = vmatprep.subr.mxu0 0.0
    %1169 = vmatpush1.msra.mxu0 0.0
    %1170 = vmatprep.subr.mxu0 0.0
    %1171 = vmatpush1.msra.mxu0 0.0
    %1172 = vmatprep.subr.mxu0 0.0
    %1173 = vmatpush1.msra.mxu0 0.0
    %1174 = vmatprep.subr.mxu0 0.0
    %1175 = vmatpush1.msra.mxu0 0.0
    %1176 = vmatprep.subr.mxu0 0.0
    %1177 = vmatpush1.msra.mxu0 0.0
    %1178 = vmatprep.subr.mxu0 0.0
    %1179 = vmatpush1.msra.mxu0 0.0
    %1180 = vmatprep.subr.mxu0 0.0
    %1181 = vmatpush1.msra.mxu0 0.0
    %1182 = vmatprep.subr.mxu0 0.0
    %1183 = vmatpush1.msra.mxu0 0.0
    %1184 = vmatprep.subr.mxu0 0.0
    %1185 = vmatpush1.msra.mxu0 0.0
    %1186 = vmatprep.subr.mxu0 0.0
    %1187 = vmatpush1.msra.mxu0 0.0
    %1188 = vmatprep.subr.mxu0 0.0
    %1189 = vmatpush1.msra.mxu0 0.0
    %1190 = vmatprep.subr.mxu0 0.0
    %1191 = vmatpush1.msra.mxu0 0.0
    %1192 = vmatprep.subr.mxu0 0.0
    %1193 = vmatpush1.msra.mxu0 0.0
    %1194 = vmatprep.subr.mxu0 0.0
    %1195 = vmatpush1.msra.mxu0 0.0
    %1196 = vmatprep.subr.mxu0 0.0
    %1197 = vmatpush1.msra.mxu0 0.0
    %1198 = vmatprep.subr.mxu0 0.0
    %1199 = vmatpush1.msra.mxu0 0.0
    %1200 = vmatprep.subr.mxu0 0.0
    %1201 = vmatpush1.msra.mxu0 0.0
    %1202 = vmatprep.subr.mxu0 0.0
    %1203 = vmatpush1.msra.mxu0 0.0
    %1204 = vmatprep.subr.mxu0 0.0
    %1205 = vmatpush1.msra.mxu0 0.0
    %1206 = vmatprep.mubr.f32.mxu0 0.0
    %1207 = vmatmul.mubr.f32.gmra.mrb[0].mxu0 %v1140
    %v1208 = vpop.f32.mrb[0].mxu0
    %v1209 = vadd.f32 %v1137, %v1208
    %v1210 = vpop.f32.mrb[0].mxu0
    %1211 = vdwg.mxu0
    %s1212 = scalar_lea.vmem %s14, 64
    %v1213 = vld [vmem:[%s1212] sm:$0xff]
    %v1214 = vld [vmem:[%s1212 + $0x8] sm:$0xff]
    %v1215 = vld [vmem:[%s1212 + $0x10] sm:$0xff]
    %v1216 = vld [vmem:[%s1212 + $0x18] sm:$0xff]
    %v1217 = vld [vmem:[%s1212 + $0x20] sm:$0xff]
    %v1218 = vld [vmem:[%s1212 + $0x28] sm:$0xff]
    %v1219 = vld [vmem:[%s1212 + $0x30] sm:$0xff]
    %v1220 = vld [vmem:[%s1212 + $0x38] sm:$0xff]
    %s1221 = scalar_lea.vmem %s15, 1
    %v1222 = vld [vmem:[%s1221] sm:$0x1]
    %v1224 = vlaneseq
    %v1225 = vshrl.u32 %v1224, 7
    %v1226 = vsub.s32 0, %v1225
    %v1227 = vrot.slane %v1222, %v1226
    %1229 = vrot.lane.b32.xlu0 %v1123, 64
    %v1230 = vpop.permute.xlu0 %1229
    %v1231 = vsel %vm742, %v1230, 0
    %1233 = vmatprep.subr.mxu0 0.0
    %1234 = vmatpush1.msra.mxu0 %v1213
    %1235 = vmatprep.subr.mxu0 0.0
    %1236 = vmatpush1.msra.mxu0 %v1214
    %1237 = vmatprep.subr.mxu0 0.0
    %1238 = vmatpush1.msra.mxu0 %v1215
    %1239 = vmatprep.subr.mxu0 0.0
    %1240 = vmatpush1.msra.mxu0 %v1216
    %1241 = vmatprep.subr.mxu0 0.0
    %1242 = vmatpush1.msra.mxu0 %v1217
    %1243 = vmatprep.subr.mxu0 0.0
    %1244 = vmatpush1.msra.mxu0 %v1218
    %1245 = vmatprep.subr.mxu0 0.0
    %1246 = vmatpush1.msra.mxu0 %v1219
    %1247 = vmatprep.subr.mxu0 0.0
    %1248 = vmatpush1.msra.mxu0 %v1220
    %1249 = vmatprep.subr.mxu0 0.0
    %1250 = vmatpush1.msra.mxu0 0.0
    %1251 = vmatprep.subr.mxu0 0.0
    %1252 = vmatpush1.msra.mxu0 0.0
    %1253 = vmatprep.subr.mxu0 0.0
    %1254 = vmatpush1.msra.mxu0 0.0
    %1255 = vmatprep.subr.mxu0 0.0
    %1256 = vmatpush1.msra.mxu0 0.0
    %1257 = vmatprep.subr.mxu0 0.0
    %1258 = vmatpush1.msra.mxu0 0.0
    %1259 = vmatprep.subr.mxu0 0.0
    %1260 = vmatpush1.msra.mxu0 0.0
    %1261 = vmatprep.subr.mxu0 0.0
    %1262 = vmatpush1.msra.mxu0 0.0
    %1263 = vmatprep.subr.mxu0 0.0
    %1264 = vmatpush1.msra.mxu0 0.0
    %1265 = vmatprep.subr.mxu0 0.0
    %1266 = vmatpush1.msra.mxu0 0.0
    %1267 = vmatprep.subr.mxu0 0.0
    %1268 = vmatpush1.msra.mxu0 0.0
    %1269 = vmatprep.subr.mxu0 0.0
    %1270 = vmatpush1.msra.mxu0 0.0
    %1271 = vmatprep.subr.mxu0 0.0
    %1272 = vmatpush1.msra.mxu0 0.0
    %1273 = vmatprep.subr.mxu0 0.0
    %1274 = vmatpush1.msra.mxu0 0.0
    %1275 = vmatprep.subr.mxu0 0.0
    %1276 = vmatpush1.msra.mxu0 0.0
    %1277 = vmatprep.subr.mxu0 0.0
    %1278 = vmatpush1.msra.mxu0 0.0
    %1279 = vmatprep.subr.mxu0 0.0
    %1280 = vmatpush1.msra.mxu0 0.0
    %1281 = vmatprep.subr.mxu0 0.0
    %1282 = vmatpush1.msra.mxu0 0.0
    %1283 = vmatprep.subr.mxu0 0.0
    %1284 = vmatpush1.msra.mxu0 0.0
    %1285 = vmatprep.subr.mxu0 0.0
    %1286 = vmatpush1.msra.mxu0 0.0
    %1287 = vmatprep.subr.mxu0 0.0
    %1288 = vmatpush1.msra.mxu0 0.0
    %1289 = vmatprep.subr.mxu0 0.0
    %1290 = vmatpush1.msra.mxu0 0.0
    %1291 = vmatprep.subr.mxu0 0.0
    %1292 = vmatpush1.msra.mxu0 0.0
    %1293 = vmatprep.subr.mxu0 0.0
    %1294 = vmatpush1.msra.mxu0 0.0
    %1295 = vmatprep.subr.mxu0 0.0
    %1296 = vmatpush1.msra.mxu0 0.0
    %1297 = vmatprep.mubr.f32.mxu0 0.0
    %1298 = vmatmul.mubr.f32.gmra.mrb[0].mxu0 %v1231
    %v1299 = vpop.f32.mrb[0].mxu0
    %v1300 = vadd.f32 %v1227, %v1299
    %v1301 = vpop.f32.mrb[0].mxu0
    %1302 = vdwg.mxu0
    %1304 = vrot.lane.b32.xlu0 %v1300, 4
    %v1305 = vpop.permute.xlu0 %1304
    %vm1307 = vcmask 31744
    %v1308 = vsel %vm1307, %v1209, %v1305
    %1309 = vst.msk [vmem:[#allocation2] sm:$0x3] %vm254, %v1308
    // Predicated region
    $region66: #{tpu_custom_call.1} parent=1 // pred_check
      _
    $region67: #{tpu_custom_call.1} parent=1 // pred_check_branch
      %1311 = sbr.rel (0) target = $region69
    $region68: #{tpu_custom_call.1} parent=1 // pred_region
      %s1313 = ssub.s32 32, 32
      %1314 = vsyncadd [#allocation3], %s1313
      %s1316 = sshll.u32 [#allocation2], 4
      %s1317 = int_to_ptr.vmem [resolvable:$true] %s1316
      %1319 = dma.vmem_to_hbm [thread:$0]  %s1317, 32, %s16, [#allocation3]
    $region69: #{tpu_custom_call.1} parent=1 // pred_fallthru
      _
    // Predicated region
    $region70: #{tpu_custom_call.1} parent=1 // pred_check
      _
    $region71: #{tpu_custom_call.1} parent=1 // pred_check_branch
      %1321 = sbr.rel (0) target = $region73
    $region72: #{tpu_custom_call.1} parent=1 // pred_region
      %1322 = dma.done [#allocation3], 32
    $region73: #{tpu_custom_call.1} parent=1 // pred_fallthru
      _
    %1323 = vsyncpa [#allocation3], 1

</llo_original>
